<compile_context>
chip_gen: v7x
topology: tpu7x:2x2x1
jax: 0.10.0
libtpu: 0.0.40
codegen_flags: <defaults>
</compile_context>

<pallas_src>
import functools
import math

import jax
import jax.numpy as jnp
from jax.experimental import pallas as pl
from jax.experimental.pallas import tpu as pltpu


# ---------------------------------------------------------------------------
# Pallas kernel
# ---------------------------------------------------------------------------
def pgmsu_kernel(
    x_ref, eps_ref,
    we1_ref, ge1_ref, be1_ref,          # fused fc1|fc9  + bn1|bn9
    we2_ref, ge2_ref, be2_ref,          # block-diag fc2|fc10 + bn2|bn10
    we3_ref, ge3_ref, be3_ref,          # block-diag fc3|fc11 + bn3|bn11
    wml_ref, bml_ref,                   # fused fc4|fc5 (mu, log_var)
    w12_ref, g12_ref, be12_ref,         # fc12 + bn12
    w13_ref, b13_ref,                   # fc13
    w6_ref, g6_ref, be6_ref,            # fc6 + bn6
    w7_ref, g7_ref, be7_ref,            # fc7 + bn7
    w8_ref, b8_ref,                     # fc8
    out_ref,
    *, P, Channel, z_dim,
):
    def lin(h, w_ref):
        # Weight ref loaded lazily at point of use.
        return jnp.dot(h, w_ref[...], preferred_element_type=jnp.float32)

    def bn_relu(h, g_ref, be_ref):
        # BatchNorm1d, training mode (biased batch stats, eps=1e-5), one sweep:
        # var = E[h^2] - E[h]^2, clamped at 0 against cancellation.
        m = jnp.mean(h, axis=0, keepdims=True)
        m2 = jnp.mean(h * h, axis=0, keepdims=True)
        var = jnp.maximum(m2 - m * m, 0.0)
        hn = (h - m) * jax.lax.rsqrt(var + 1e-5)
        # F.leaky_relu(., 0.0) == relu
        return jnp.maximum(g_ref[...] * hn + be_ref[...], 0.0)

    x = x_ref[...]

    # ---- fused encoder prefix (encoder_z || encoder_a), 3 levels ----
    h = bn_relu(lin(x, we1_ref), ge1_ref, be1_ref)    # (N, 64P)
    h = bn_relu(lin(h, we2_ref), ge2_ref, be2_ref)    # (N, 32P)
    h = bn_relu(lin(h, we3_ref), ge3_ref, be3_ref)    # (N, 8P)
    hz = h[:, : 4 * P]                                # encoder_z branch
    ha = h[:, 4 * P:]                                 # encoder_a branch

    # ---- encoder_z tail: fused fc4|fc5 ----
    mulv = lin(hz, wml_ref) + bml_ref[...]            # (N, 2*z_dim)
    mu = mulv[:, :z_dim]
    log_var = mulv[:, z_dim:]

    # ---- encoder_a tail: fc12/bn12 -> fc13 -> softmax ----
    h = bn_relu(lin(ha, w12_ref), g12_ref, be12_ref)  # (N, 4P)
    logits = lin(h, w13_ref) + b13_ref[...]           # (N, P)
    mx = jnp.max(logits, axis=1, keepdims=True)
    e = jnp.exp(logits - mx)
    denom = jnp.sum(e, axis=1, keepdims=True)
    a = e * pl.reciprocal(denom, approx=True)         # softmax over dim=1

    # ---- reparameterize ----
    z = mu + eps_ref[...] * jnp.exp(0.5 * log_var)

    # ---- decoder: fc6/bn6 -> fc7/bn7 -> fc8 -> sigmoid ----
    h = bn_relu(lin(z, w6_ref), g6_ref, be6_ref)      # (N, 4P)
    h = bn_relu(lin(h, w7_ref), g7_ref, be7_ref)      # (N, 64P)
    em = jax.nn.sigmoid(lin(h, w8_ref) + b8_ref[...]) # (N, P*Channel)

    # ---- y_hat = squeeze(a_tensor @ em_tensor), static unroll over P ----
    y_hat = a[:, 0:1] * em[:, 0:Channel]
    for p in range(1, P):
        y_hat = y_hat + a[:, p:p + 1] * em[:, p * Channel:(p + 1) * Channel]

    # Single lane-contiguous output slab: [y_hat | mu | log_var | a | em]
    out_ref[...] = jnp.concatenate([y_hat, mu, log_var, a, em], axis=1)


# ---------------------------------------------------------------------------
# Wrapper
# ---------------------------------------------------------------------------
def pgmsu_forward(x, eps, kparams, *, P, Channel, z_dim):
    N = x.shape[0]
    out_w = Channel + 2 * z_dim + P + P * Channel
    vmem = pl.BlockSpec(memory_space=pltpu.MemorySpace.VMEM)

    out = pl.pallas_call(
        functools.partial(pgmsu_kernel, P=P, Channel=Channel, z_dim=z_dim),
        out_shape=jax.ShapeDtypeStruct((N, out_w), jnp.float32),
        in_specs=[vmem] * (2 + len(kparams)),
        out_specs=vmem,
    )(x, eps, *kparams)

    c0 = Channel
    c1 = c0 + z_dim
    c2 = c1 + z_dim
    c3 = c2 + P
    y_hat = out[:, :c0]
    mu = out[:, c0:c1]
    log_var = out[:, c1:c2]
    a = out[:, c2:c3]
    em = out[:, c3:]
    em_tensor = em.reshape(N, P, Channel)
    return y_hat, mu, log_var, a, em_tensor


# ---------------------------------------------------------------------------
# Parameter construction (PyTorch-style layout) and kernel-side fusion prep
# ---------------------------------------------------------------------------
def init_torch_params(key, P, Channel, z_dim):
    """PyTorch-layout params: fc*_w is (out, in), fc*_b is (out,);
    bn*_g / bn*_be are (features,). BN params are perturbed from (1, 0)
    so the correctness check actually exercises the affine transform."""
    lin_defs = {
        "fc1": (Channel, 32 * P), "fc2": (32 * P, 16 * P), "fc3": (16 * P, 4 * P),
        "fc4": (4 * P, z_dim), "fc5": (4 * P, z_dim),
        "fc9": (Channel, 32 * P), "fc10": (32 * P, 16 * P), "fc11": (16 * P, 4 * P),
        "fc12": (4 * P, 4 * P), "fc13": (4 * P, P),
        "fc6": (z_dim, 4 * P), "fc7": (4 * P, 64 * P), "fc8": (64 * P, Channel * P),
    }
    bn_defs = {
        "bn1": 32 * P, "bn2": 16 * P, "bn3": 4 * P,
        "bn9": 32 * P, "bn10": 16 * P, "bn11": 4 * P, "bn12": 4 * P,
        "bn6": 4 * P, "bn7": 64 * P,
    }
    tp = {}
    keys = jax.random.split(key, len(lin_defs) + len(bn_defs))
    ki = 0
    for name, (fi, fo) in lin_defs.items():
        kw, kb = jax.random.split(keys[ki]); ki += 1
        bound = 1.0 / math.sqrt(fi)
        tp[name + "_w"] = jax.random.uniform(kw, (fo, fi), jnp.float32, -bound, bound)
        tp[name + "_b"] = jax.random.uniform(kb, (fo,), jnp.float32, -bound, bound)
    for name, feat in bn_defs.items():
        kg, kb = jax.random.split(keys[ki]); ki += 1
        tp[name + "_g"] = 1.0 + 0.1 * jax.random.uniform(kg, (feat,), jnp.float32, -1.0, 1.0)
        tp[name + "_be"] = 0.1 * jax.random.normal(kb, (feat,), jnp.float32)
    return tp


def prepare_params(tp, P, Channel, z_dim):
    """Build the fused / transposed parameter list the kernel consumes.
    Linear biases feeding a training-mode BatchNorm are dropped (the batch-mean
    subtraction cancels them exactly)."""
    T = lambda n: jnp.asarray(tp[n + "_w"], jnp.float32).T            # (in, out)
    B = lambda n: jnp.asarray(tp[n + "_b"], jnp.float32).reshape(1, -1)
    G = lambda n: jnp.asarray(tp[n + "_g"], jnp.float32).reshape(1, -1)
    BE = lambda n: jnp.asarray(tp[n + "_be"], jnp.float32).reshape(1, -1)

    def block_diag(wa, wb):
        ia, oa = wa.shape
        ib, ob = wb.shape
        top = jnp.concatenate([wa, jnp.zeros((ia, ob), jnp.float32)], axis=1)
        bot = jnp.concatenate([jnp.zeros((ib, oa), jnp.float32), wb], axis=1)
        return jnp.concatenate([top, bot], axis=0)

    return [
        # fused level 1 (shared input x)
        jnp.concatenate([T("fc1"), T("fc9")], axis=1),       # we1 (Channel, 64P)
        jnp.concatenate([G("bn1"), G("bn9")], axis=1),
        jnp.concatenate([BE("bn1"), BE("bn9")], axis=1),
        # fused level 2 (block-diagonal)
        block_diag(T("fc2"), T("fc10")),                     # we2 (64P, 32P)
        jnp.concatenate([G("bn2"), G("bn10")], axis=1),
        jnp.concatenate([BE("bn2"), BE("bn10")], axis=1),
        # fused level 3 (block-diagonal)
        block_diag(T("fc3"), T("fc11")),                     # we3 (32P, 8P)
        jnp.concatenate([G("bn3"), G("bn11")], axis=1),
        jnp.concatenate([BE("bn3"), BE("bn11")], axis=1),
        # fused mu | log_var head
        jnp.concatenate([T("fc4"), T("fc5")], axis=1),       # wml (4P, 2*z_dim)
        jnp.concatenate([B("fc4"), B("fc5")], axis=1),
        # encoder_a tail
        T("fc12"), G("bn12"), BE("bn12"),
        T("fc13"), B("fc13"),
        # decoder
        T("fc6"), G("bn6"), BE("bn6"),
        T("fc7"), G("bn7"), BE("bn7"),
        T("fc8"), B("fc8"),
    ]


# ---------------------------------------------------------------------------
# Pure-JAX reference: faithful transcription of the original PyTorch forward
# (unfused weights, two-pass BN, exact division).
# ---------------------------------------------------------------------------
def pgmsu_reference(x, eps, tp, P, Channel, z_dim):
    def lin(h, name):
        return h @ tp[name + "_w"].T + tp[name + "_b"]

    def bn(h, name):
        mean = jnp.mean(h, axis=0, keepdims=True)
        var = jnp.mean((h - mean) ** 2, axis=0, keepdims=True)
        return tp[name + "_g"] * (h - mean) / jnp.sqrt(var + 1e-5) + tp[name + "_be"]

    relu = lambda h: jnp.maximum(h, 0.0)

    # encoder_z
    h = relu(bn(lin(x, "fc1"), "bn1"))
    h = relu(bn(lin(h, "fc2"), "bn2"))
    h = relu(bn(lin(h, "fc3"), "bn3"))
    mu = lin(h, "fc4")
    log_var = lin(h, "fc5")
    # encoder_a
    h = relu(bn(lin(x, "fc9"), "bn9"))
    h = relu(bn(lin(h, "fc10"), "bn10"))
    h = relu(bn(lin(h, "fc11"), "bn11"))
    h = relu(bn(lin(h, "fc12"), "bn12"))
    a = jax.nn.softmax(lin(h, "fc13"), axis=1)
    # reparameterize
    z = mu + eps * jnp.exp(0.5 * log_var)
    # decoder
    h = relu(bn(lin(z, "fc6"), "bn6"))
    h = relu(bn(lin(h, "fc7"), "bn7"))
    em = jax.nn.sigmoid(lin(h, "fc8"))
    em_tensor = em.reshape(-1, P, Channel)
    y_hat = jnp.einsum("np,npc->nc", a, em_tensor)
    return y_hat, mu, log_var, a, em_tensor


# ---------------------------------------------------------------------------
if __name__ == "__main__":
    P, Channel, z_dim = 4, 16, 4
    N = 64  # batch of pixels

    key = jax.random.PRNGKey(0)
    kx, keps, kp = jax.random.split(key, 3)
    x = jax.random.uniform(kx, (N, Channel), jnp.float32)
    eps = jax.random.normal(keps, (N, z_dim), jnp.float32)

    tp = init_torch_params(kp, P, Channel, z_dim)
    kparams = prepare_params(tp, P, Channel, z_dim)

    fwd = jax.jit(functools.partial(pgmsu_forward, P=P, Channel=Channel, z_dim=z_dim))
    outs = jax.block_until_ready(fwd(x, eps, kparams))
    y_hat, mu, log_var, a, em_tensor = outs

    # Reference check (f32 path). `a`/`y_hat` get a slightly wider tolerance to
    # cover the EUP approximate reciprocal used in the in-kernel softmax.
    ry, rmu, rlv, ra, rem = pgmsu_reference(x, eps, tp, P, Channel, z_dim)
    checks = [
        ("y_hat", y_hat, ry, 3e-3),
        ("mu", mu, rmu, 5e-4),
        ("log_var", log_var, rlv, 5e-4),
        ("a", a, ra, 3e-3),
        ("em_tensor", em_tensor, rem, 5e-4),
    ]
    for name, got, ref, tol in checks:
        assert got.shape == ref.shape, (name, got.shape, ref.shape)
        assert bool(jnp.all(jnp.isfinite(got))), name
        err = float(jnp.max(jnp.abs(got - ref)))
        assert err < tol, (name, err, tol)

    print("KERNEL_OK")
</pallas_src>

<mosaic_0001>
module attributes {stable_mosaic.version = 11 : i64} {
  func.func @pgmsu_kernel(%arg0: memref<64x16xf32, #tpu.memory_space<vmem>>, %arg1: memref<64x4xf32, #tpu.memory_space<vmem>>, %arg2: memref<16x256xf32, #tpu.memory_space<vmem>>, %arg3: memref<1x256xf32, #tpu.memory_space<vmem>>, %arg4: memref<1x256xf32, #tpu.memory_space<vmem>>, %arg5: memref<256x128xf32, #tpu.memory_space<vmem>>, %arg6: memref<1x128xf32, #tpu.memory_space<vmem>>, %arg7: memref<1x128xf32, #tpu.memory_space<vmem>>, %arg8: memref<128x32xf32, #tpu.memory_space<vmem>>, %arg9: memref<1x32xf32, #tpu.memory_space<vmem>>, %arg10: memref<1x32xf32, #tpu.memory_space<vmem>>, %arg11: memref<16x8xf32, #tpu.memory_space<vmem>>, %arg12: memref<1x8xf32, #tpu.memory_space<vmem>>, %arg13: memref<16x16xf32, #tpu.memory_space<vmem>>, %arg14: memref<1x16xf32, #tpu.memory_space<vmem>>, %arg15: memref<1x16xf32, #tpu.memory_space<vmem>>, %arg16: memref<16x4xf32, #tpu.memory_space<vmem>>, %arg17: memref<1x4xf32, #tpu.memory_space<vmem>>, %arg18: memref<4x16xf32, #tpu.memory_space<vmem>>, %arg19: memref<1x16xf32, #tpu.memory_space<vmem>>, %arg20: memref<1x16xf32, #tpu.memory_space<vmem>>, %arg21: memref<16x256xf32, #tpu.memory_space<vmem>>, %arg22: memref<1x256xf32, #tpu.memory_space<vmem>>, %arg23: memref<1x256xf32, #tpu.memory_space<vmem>>, %arg24: memref<256x64xf32, #tpu.memory_space<vmem>>, %arg25: memref<1x64xf32, #tpu.memory_space<vmem>>, %arg26: memref<64x92xf32, #tpu.memory_space<vmem>>) attributes {dimension_semantics = [], scalar_prefetch = 0 : i64, scratch_operands = 0 : i64, tpu.core_type = #tpu.core_type<tc>} {
    %c0 = arith.constant 0 : index
    %c0_0 = arith.constant 0 : index
    %0 = vector.load %arg0[%c0, %c0_0] : memref<64x16xf32, #tpu.memory_space<vmem>>, vector<64x16xf32>
    %c0_1 = arith.constant 0 : index
    %c0_2 = arith.constant 0 : index
    %1 = vector.load %arg2[%c0_1, %c0_2] : memref<16x256xf32, #tpu.memory_space<vmem>>, vector<16x256xf32>
    %cst = arith.constant dense<0.000000e+00> : vector<64x256xf32>
    %2 = tpu.matmul %0, %1, %cst {dimension_numbers = #tpu.dot_dimension_numbers<[1], [0], [0], [1], [0, 0, 1, 1], [], []>} : vector<64x16xf32>, vector<16x256xf32>, vector<64x256xf32> -> vector<64x256xf32>
    %cst_3 = arith.constant dense<0.000000e+00> : vector<256xf32>
    %3 = vector.multi_reduction <add>, %2, %cst_3 [0] : vector<64x256xf32> to vector<256xf32>
    %4 = vector.shape_cast %3 : vector<256xf32> to vector<1x256xf32>
    %cst_4 = arith.constant 6.400000e+01 : f32
    %5 = vector.broadcast %cst_4 : f32 to vector<1x256xf32>
    %6 = arith.divf %4, %5 : vector<1x256xf32>
    %7 = arith.mulf %2, %2 : vector<64x256xf32>
    %cst_5 = arith.constant dense<0.000000e+00> : vector<256xf32>
    %8 = vector.multi_reduction <add>, %7, %cst_5 [0] : vector<64x256xf32> to vector<256xf32>
    %9 = vector.shape_cast %8 : vector<256xf32> to vector<1x256xf32>
    %cst_6 = arith.constant 6.400000e+01 : f32
    %10 = vector.broadcast %cst_6 : f32 to vector<1x256xf32>
    %11 = arith.divf %9, %10 : vector<1x256xf32>
    %12 = arith.mulf %6, %6 : vector<1x256xf32>
    %13 = arith.subf %11, %12 : vector<1x256xf32>
    %cst_7 = arith.constant 0.000000e+00 : f32
    %14 = vector.broadcast %cst_7 : f32 to vector<1x256xf32>
    %15 = arith.maximumf %13, %14 : vector<1x256xf32>
    %16 = vector.broadcast %6 : vector<1x256xf32> to vector<64x256xf32>
    %17 = arith.subf %2, %16 : vector<64x256xf32>
    %cst_8 = arith.constant 9.99999974E-6 : f32
    %18 = vector.broadcast %cst_8 : f32 to vector<1x256xf32>
    %19 = arith.addf %15, %18 : vector<1x256xf32>
    %20 = math.rsqrt %19 : vector<1x256xf32>
    %21 = vector.broadcast %20 : vector<1x256xf32> to vector<64x256xf32>
    %22 = arith.mulf %17, %21 : vector<64x256xf32>
    %c0_9 = arith.constant 0 : index
    %c0_10 = arith.constant 0 : index
    %23 = vector.load %arg3[%c0_9, %c0_10] : memref<1x256xf32, #tpu.memory_space<vmem>>, vector<1x256xf32>
    %24 = vector.broadcast %23 : vector<1x256xf32> to vector<64x256xf32>
    %25 = arith.mulf %24, %22 : vector<64x256xf32>
    %c0_11 = arith.constant 0 : index
    %c0_12 = arith.constant 0 : index
    %26 = vector.load %arg4[%c0_11, %c0_12] : memref<1x256xf32, #tpu.memory_space<vmem>>, vector<1x256xf32>
    %27 = vector.broadcast %26 : vector<1x256xf32> to vector<64x256xf32>
    %28 = arith.addf %25, %27 : vector<64x256xf32>
    %cst_13 = arith.constant 0.000000e+00 : f32
    %29 = vector.broadcast %cst_13 : f32 to vector<64x256xf32>
    %30 = arith.maximumf %28, %29 : vector<64x256xf32>
    %c0_14 = arith.constant 0 : index
    %c0_15 = arith.constant 0 : index
    %31 = vector.load %arg5[%c0_14, %c0_15] : memref<256x128xf32, #tpu.memory_space<vmem>>, vector<256x128xf32>
    %cst_16 = arith.constant dense<0.000000e+00> : vector<64x128xf32>
    %32 = tpu.matmul %30, %31, %cst_16 {dimension_numbers = #tpu.dot_dimension_numbers<[1], [0], [0], [1], [0, 0, 1, 1], [], []>} : vector<64x256xf32>, vector<256x128xf32>, vector<64x128xf32> -> vector<64x128xf32>
    %cst_17 = arith.constant dense<0.000000e+00> : vector<128xf32>
    %33 = vector.multi_reduction <add>, %32, %cst_17 [0] : vector<64x128xf32> to vector<128xf32>
    %34 = vector.shape_cast %33 : vector<128xf32> to vector<1x128xf32>
    %cst_18 = arith.constant 6.400000e+01 : f32
    %35 = vector.broadcast %cst_18 : f32 to vector<1x128xf32>
    %36 = arith.divf %34, %35 : vector<1x128xf32>
    %37 = arith.mulf %32, %32 : vector<64x128xf32>
    %cst_19 = arith.constant dense<0.000000e+00> : vector<128xf32>
    %38 = vector.multi_reduction <add>, %37, %cst_19 [0] : vector<64x128xf32> to vector<128xf32>
    %39 = vector.shape_cast %38 : vector<128xf32> to vector<1x128xf32>
    %cst_20 = arith.constant 6.400000e+01 : f32
    %40 = vector.broadcast %cst_20 : f32 to vector<1x128xf32>
    %41 = arith.divf %39, %40 : vector<1x128xf32>
    %42 = arith.mulf %36, %36 : vector<1x128xf32>
    %43 = arith.subf %41, %42 : vector<1x128xf32>
    %cst_21 = arith.constant 0.000000e+00 : f32
    %44 = vector.broadcast %cst_21 : f32 to vector<1x128xf32>
    %45 = arith.maximumf %43, %44 : vector<1x128xf32>
    %46 = vector.broadcast %36 : vector<1x128xf32> to vector<64x128xf32>
    %47 = arith.subf %32, %46 : vector<64x128xf32>
    %cst_22 = arith.constant 9.99999974E-6 : f32
    %48 = vector.broadcast %cst_22 : f32 to vector<1x128xf32>
    %49 = arith.addf %45, %48 : vector<1x128xf32>
    %50 = math.rsqrt %49 : vector<1x128xf32>
    %51 = vector.broadcast %50 : vector<1x128xf32> to vector<64x128xf32>
    %52 = arith.mulf %47, %51 : vector<64x128xf32>
    %c0_23 = arith.constant 0 : index
    %c0_24 = arith.constant 0 : index
    %53 = vector.load %arg6[%c0_23, %c0_24] : memref<1x128xf32, #tpu.memory_space<vmem>>, vector<1x128xf32>
    %54 = vector.broadcast %53 : vector<1x128xf32> to vector<64x128xf32>
    %55 = arith.mulf %54, %52 : vector<64x128xf32>
    %c0_25 = arith.constant 0 : index
    %c0_26 = arith.constant 0 : index
    %56 = vector.load %arg7[%c0_25, %c0_26] : memref<1x128xf32, #tpu.memory_space<vmem>>, vector<1x128xf32>
    %57 = vector.broadcast %56 : vector<1x128xf32> to vector<64x128xf32>
    %58 = arith.addf %55, %57 : vector<64x128xf32>
    %cst_27 = arith.constant 0.000000e+00 : f32
    %59 = vector.broadcast %cst_27 : f32 to vector<64x128xf32>
    %60 = arith.maximumf %58, %59 : vector<64x128xf32>
    %c0_28 = arith.constant 0 : index
    %c0_29 = arith.constant 0 : index
    %61 = vector.load %arg8[%c0_28, %c0_29] : memref<128x32xf32, #tpu.memory_space<vmem>>, vector<128x32xf32>
    %cst_30 = arith.constant dense<0.000000e+00> : vector<64x32xf32>
    %62 = tpu.matmul %60, %61, %cst_30 {dimension_numbers = #tpu.dot_dimension_numbers<[1], [0], [0], [1], [0, 0, 1, 1], [], []>} : vector<64x128xf32>, vector<128x32xf32>, vector<64x32xf32> -> vector<64x32xf32>
    %cst_31 = arith.constant dense<0.000000e+00> : vector<32xf32>
    %63 = vector.multi_reduction <add>, %62, %cst_31 [0] : vector<64x32xf32> to vector<32xf32>
    %64 = vector.shape_cast %63 : vector<32xf32> to vector<1x32xf32>
    %cst_32 = arith.constant 6.400000e+01 : f32
    %65 = vector.broadcast %cst_32 : f32 to vector<1x32xf32>
    %66 = arith.divf %64, %65 : vector<1x32xf32>
    %67 = arith.mulf %62, %62 : vector<64x32xf32>
    %cst_33 = arith.constant dense<0.000000e+00> : vector<32xf32>
    %68 = vector.multi_reduction <add>, %67, %cst_33 [0] : vector<64x32xf32> to vector<32xf32>
    %69 = vector.shape_cast %68 : vector<32xf32> to vector<1x32xf32>
    %cst_34 = arith.constant 6.400000e+01 : f32
    %70 = vector.broadcast %cst_34 : f32 to vector<1x32xf32>
    %71 = arith.divf %69, %70 : vector<1x32xf32>
    %72 = arith.mulf %66, %66 : vector<1x32xf32>
    %73 = arith.subf %71, %72 : vector<1x32xf32>
    %cst_35 = arith.constant 0.000000e+00 : f32
    %74 = vector.broadcast %cst_35 : f32 to vector<1x32xf32>
    %75 = arith.maximumf %73, %74 : vector<1x32xf32>
    %76 = vector.broadcast %66 : vector<1x32xf32> to vector<64x32xf32>
    %77 = arith.subf %62, %76 : vector<64x32xf32>
    %cst_36 = arith.constant 9.99999974E-6 : f32
    %78 = vector.broadcast %cst_36 : f32 to vector<1x32xf32>
    %79 = arith.addf %75, %78 : vector<1x32xf32>
    %80 = math.rsqrt %79 : vector<1x32xf32>
    %81 = vector.broadcast %80 : vector<1x32xf32> to vector<64x32xf32>
    %82 = arith.mulf %77, %81 : vector<64x32xf32>
    %c0_37 = arith.constant 0 : index
    %c0_38 = arith.constant 0 : index
    %83 = vector.load %arg9[%c0_37, %c0_38] : memref<1x32xf32, #tpu.memory_space<vmem>>, vector<1x32xf32>
    %84 = vector.broadcast %83 : vector<1x32xf32> to vector<64x32xf32>
    %85 = arith.mulf %84, %82 : vector<64x32xf32>
    %c0_39 = arith.constant 0 : index
    %c0_40 = arith.constant 0 : index
    %86 = vector.load %arg10[%c0_39, %c0_40] : memref<1x32xf32, #tpu.memory_space<vmem>>, vector<1x32xf32>
    %87 = vector.broadcast %86 : vector<1x32xf32> to vector<64x32xf32>
    %88 = arith.addf %85, %87 : vector<64x32xf32>
    %cst_41 = arith.constant 0.000000e+00 : f32
    %89 = vector.broadcast %cst_41 : f32 to vector<64x32xf32>
    %90 = arith.maximumf %88, %89 : vector<64x32xf32>
    %91 = vector.extract_strided_slice %90 {offsets = [0, 0], sizes = [64, 16], strides = [1, 1]} : vector<64x32xf32> to vector<64x16xf32>
    %92 = vector.extract_strided_slice %90 {offsets = [0, 16], sizes = [64, 16], strides = [1, 1]} : vector<64x32xf32> to vector<64x16xf32>
    %c0_42 = arith.constant 0 : index
    %c0_43 = arith.constant 0 : index
    %93 = vector.load %arg11[%c0_42, %c0_43] : memref<16x8xf32, #tpu.memory_space<vmem>>, vector<16x8xf32>
    %cst_44 = arith.constant dense<0.000000e+00> : vector<64x8xf32>
    %94 = tpu.matmul %91, %93, %cst_44 {dimension_numbers = #tpu.dot_dimension_numbers<[1], [0], [0], [1], [0, 0, 1, 1], [], []>} : vector<64x16xf32>, vector<16x8xf32>, vector<64x8xf32> -> vector<64x8xf32>
    %c0_45 = arith.constant 0 : index
    %c0_46 = arith.constant 0 : index
    %95 = vector.load %arg12[%c0_45, %c0_46] : memref<1x8xf32, #tpu.memory_space<vmem>>, vector<1x8xf32>
    %96 = vector.broadcast %95 : vector<1x8xf32> to vector<64x8xf32>
    %97 = arith.addf %94, %96 : vector<64x8xf32>
    %98 = vector.extract_strided_slice %97 {offsets = [0, 0], sizes = [64, 4], strides = [1, 1]} : vector<64x8xf32> to vector<64x4xf32>
    %99 = vector.extract_strided_slice %97 {offsets = [0, 4], sizes = [64, 4], strides = [1, 1]} : vector<64x8xf32> to vector<64x4xf32>
    %c0_47 = arith.constant 0 : index
    %c0_48 = arith.constant 0 : index
    %100 = vector.load %arg13[%c0_47, %c0_48] : memref<16x16xf32, #tpu.memory_space<vmem>>, vector<16x16xf32>
    %cst_49 = arith.constant dense<0.000000e+00> : vector<64x16xf32>
    %101 = tpu.matmul %92, %100, %cst_49 {dimension_numbers = #tpu.dot_dimension_numbers<[1], [0], [0], [1], [0, 0, 1, 1], [], []>} : vector<64x16xf32>, vector<16x16xf32>, vector<64x16xf32> -> vector<64x16xf32>
    %cst_50 = arith.constant dense<0.000000e+00> : vector<16xf32>
    %102 = vector.multi_reduction <add>, %101, %cst_50 [0] : vector<64x16xf32> to vector<16xf32>
    %103 = vector.shape_cast %102 : vector<16xf32> to vector<1x16xf32>
    %cst_51 = arith.constant 6.400000e+01 : f32
    %104 = vector.broadcast %cst_51 : f32 to vector<1x16xf32>
    %105 = arith.divf %103, %104 : vector<1x16xf32>
    %106 = arith.mulf %101, %101 : vector<64x16xf32>
    %cst_52 = arith.constant dense<0.000000e+00> : vector<16xf32>
    %107 = vector.multi_reduction <add>, %106, %cst_52 [0] : vector<64x16xf32> to vector<16xf32>
    %108 = vector.shape_cast %107 : vector<16xf32> to vector<1x16xf32>
    %cst_53 = arith.constant 6.400000e+01 : f32
    %109 = vector.broadcast %cst_53 : f32 to vector<1x16xf32>
    %110 = arith.divf %108, %109 : vector<1x16xf32>
    %111 = arith.mulf %105, %105 : vector<1x16xf32>
    %112 = arith.subf %110, %111 : vector<1x16xf32>
    %cst_54 = arith.constant 0.000000e+00 : f32
    %113 = vector.broadcast %cst_54 : f32 to vector<1x16xf32>
    %114 = arith.maximumf %112, %113 : vector<1x16xf32>
    %115 = vector.broadcast %105 : vector<1x16xf32> to vector<64x16xf32>
    %116 = arith.subf %101, %115 : vector<64x16xf32>
    %cst_55 = arith.constant 9.99999974E-6 : f32
    %117 = vector.broadcast %cst_55 : f32 to vector<1x16xf32>
    %118 = arith.addf %114, %117 : vector<1x16xf32>
    %119 = math.rsqrt %118 : vector<1x16xf32>
    %120 = vector.broadcast %119 : vector<1x16xf32> to vector<64x16xf32>
    %121 = arith.mulf %116, %120 : vector<64x16xf32>
    %c0_56 = arith.constant 0 : index
    %c0_57 = arith.constant 0 : index
    %122 = vector.load %arg14[%c0_56, %c0_57] : memref<1x16xf32, #tpu.memory_space<vmem>>, vector<1x16xf32>
    %123 = vector.broadcast %122 : vector<1x16xf32> to vector<64x16xf32>
    %124 = arith.mulf %123, %121 : vector<64x16xf32>
    %c0_58 = arith.constant 0 : index
    %c0_59 = arith.constant 0 : index
    %125 = vector.load %arg15[%c0_58, %c0_59] : memref<1x16xf32, #tpu.memory_space<vmem>>, vector<1x16xf32>
    %126 = vector.broadcast %125 : vector<1x16xf32> to vector<64x16xf32>
    %127 = arith.addf %124, %126 : vector<64x16xf32>
    %cst_60 = arith.constant 0.000000e+00 : f32
    %128 = vector.broadcast %cst_60 : f32 to vector<64x16xf32>
    %129 = arith.maximumf %127, %128 : vector<64x16xf32>
    %c0_61 = arith.constant 0 : index
    %c0_62 = arith.constant 0 : index
    %130 = vector.load %arg16[%c0_61, %c0_62] : memref<16x4xf32, #tpu.memory_space<vmem>>, vector<16x4xf32>
    %cst_63 = arith.constant dense<0.000000e+00> : vector<64x4xf32>
    %131 = tpu.matmul %129, %130, %cst_63 {dimension_numbers = #tpu.dot_dimension_numbers<[1], [0], [0], [1], [0, 0, 1, 1], [], []>} : vector<64x16xf32>, vector<16x4xf32>, vector<64x4xf32> -> vector<64x4xf32>
    %c0_64 = arith.constant 0 : index
    %c0_65 = arith.constant 0 : index
    %132 = vector.load %arg17[%c0_64, %c0_65] : memref<1x4xf32, #tpu.memory_space<vmem>>, vector<1x4xf32>
    %133 = vector.broadcast %132 : vector<1x4xf32> to vector<64x4xf32>
    %134 = arith.addf %131, %133 : vector<64x4xf32>
    %cst_66 = arith.constant dense<0xFF800000> : vector<64xf32>
    %135 = vector.multi_reduction <maximumf>, %134, %cst_66 [1] : vector<64x4xf32> to vector<64xf32>
    %136 = vector.shape_cast %135 : vector<64xf32> to vector<64x1xf32>
    %137 = vector.broadcast %136 : vector<64x1xf32> to vector<64x4xf32>
    %138 = arith.subf %134, %137 : vector<64x4xf32>
    %139 = math.exp %138 : vector<64x4xf32>
    %cst_67 = arith.constant dense<0.000000e+00> : vector<64xf32>
    %140 = vector.multi_reduction <add>, %139, %cst_67 [1] : vector<64x4xf32> to vector<64xf32>
    %141 = vector.shape_cast %140 : vector<64xf32> to vector<64x1xf32>
    %142 = tpu.reciprocal %141 {approx = true} : vector<64x1xf32> -> vector<64x1xf32>
    %143 = vector.broadcast %142 : vector<64x1xf32> to vector<64x4xf32>
    %144 = arith.mulf %139, %143 : vector<64x4xf32>
    %c0_68 = arith.constant 0 : index
    %c0_69 = arith.constant 0 : index
    %145 = vector.load %arg1[%c0_68, %c0_69] : memref<64x4xf32, #tpu.memory_space<vmem>>, vector<64x4xf32>
    %cst_70 = arith.constant 5.000000e-01 : f32
    %146 = vector.broadcast %cst_70 : f32 to vector<64x4xf32>
    %147 = arith.mulf %146, %99 : vector<64x4xf32>
    %148 = math.exp %147 : vector<64x4xf32>
    %149 = arith.mulf %145, %148 : vector<64x4xf32>
    %150 = arith.addf %98, %149 : vector<64x4xf32>
    %c0_71 = arith.constant 0 : index
    %c0_72 = arith.constant 0 : index
    %151 = vector.load %arg18[%c0_71, %c0_72] : memref<4x16xf32, #tpu.memory_space<vmem>>, vector<4x16xf32>
    %cst_73 = arith.constant dense<0.000000e+00> : vector<64x16xf32>
    %152 = tpu.matmul %150, %151, %cst_73 {dimension_numbers = #tpu.dot_dimension_numbers<[1], [0], [0], [1], [0, 0, 1, 1], [], []>} : vector<64x4xf32>, vector<4x16xf32>, vector<64x16xf32> -> vector<64x16xf32>
    %cst_74 = arith.constant dense<0.000000e+00> : vector<16xf32>
    %153 = vector.multi_reduction <add>, %152, %cst_74 [0] : vector<64x16xf32> to vector<16xf32>
    %154 = vector.shape_cast %153 : vector<16xf32> to vector<1x16xf32>
    %cst_75 = arith.constant 6.400000e+01 : f32
    %155 = vector.broadcast %cst_75 : f32 to vector<1x16xf32>
    %156 = arith.divf %154, %155 : vector<1x16xf32>
    %157 = arith.mulf %152, %152 : vector<64x16xf32>
    %cst_76 = arith.constant dense<0.000000e+00> : vector<16xf32>
    %158 = vector.multi_reduction <add>, %157, %cst_76 [0] : vector<64x16xf32> to vector<16xf32>
    %159 = vector.shape_cast %158 : vector<16xf32> to vector<1x16xf32>
    %cst_77 = arith.constant 6.400000e+01 : f32
    %160 = vector.broadcast %cst_77 : f32 to vector<1x16xf32>
    %161 = arith.divf %159, %160 : vector<1x16xf32>
    %162 = arith.mulf %156, %156 : vector<1x16xf32>
    %163 = arith.subf %161, %162 : vector<1x16xf32>
    %cst_78 = arith.constant 0.000000e+00 : f32
    %164 = vector.broadcast %cst_78 : f32 to vector<1x16xf32>
    %165 = arith.maximumf %163, %164 : vector<1x16xf32>
    %166 = vector.broadcast %156 : vector<1x16xf32> to vector<64x16xf32>
    %167 = arith.subf %152, %166 : vector<64x16xf32>
    %cst_79 = arith.constant 9.99999974E-6 : f32
    %168 = vector.broadcast %cst_79 : f32 to vector<1x16xf32>
    %169 = arith.addf %165, %168 : vector<1x16xf32>
    %170 = math.rsqrt %169 : vector<1x16xf32>
    %171 = vector.broadcast %170 : vector<1x16xf32> to vector<64x16xf32>
    %172 = arith.mulf %167, %171 : vector<64x16xf32>
    %c0_80 = arith.constant 0 : index
    %c0_81 = arith.constant 0 : index
    %173 = vector.load %arg19[%c0_80, %c0_81] : memref<1x16xf32, #tpu.memory_space<vmem>>, vector<1x16xf32>
    %174 = vector.broadcast %173 : vector<1x16xf32> to vector<64x16xf32>
    %175 = arith.mulf %174, %172 : vector<64x16xf32>
    %c0_82 = arith.constant 0 : index
    %c0_83 = arith.constant 0 : index
    %176 = vector.load %arg20[%c0_82, %c0_83] : memref<1x16xf32, #tpu.memory_space<vmem>>, vector<1x16xf32>
    %177 = vector.broadcast %176 : vector<1x16xf32> to vector<64x16xf32>
    %178 = arith.addf %175, %177 : vector<64x16xf32>
    %cst_84 = arith.constant 0.000000e+00 : f32
    %179 = vector.broadcast %cst_84 : f32 to vector<64x16xf32>
    %180 = arith.maximumf %178, %179 : vector<64x16xf32>
    %c0_85 = arith.constant 0 : index
    %c0_86 = arith.constant 0 : index
    %181 = vector.load %arg21[%c0_85, %c0_86] : memref<16x256xf32, #tpu.memory_space<vmem>>, vector<16x256xf32>
    %cst_87 = arith.constant dense<0.000000e+00> : vector<64x256xf32>
    %182 = tpu.matmul %180, %181, %cst_87 {dimension_numbers = #tpu.dot_dimension_numbers<[1], [0], [0], [1], [0, 0, 1, 1], [], []>} : vector<64x16xf32>, vector<16x256xf32>, vector<64x256xf32> -> vector<64x256xf32>
    %cst_88 = arith.constant dense<0.000000e+00> : vector<256xf32>
    %183 = vector.multi_reduction <add>, %182, %cst_88 [0] : vector<64x256xf32> to vector<256xf32>
    %184 = vector.shape_cast %183 : vector<256xf32> to vector<1x256xf32>
    %cst_89 = arith.constant 6.400000e+01 : f32
    %185 = vector.broadcast %cst_89 : f32 to vector<1x256xf32>
    %186 = arith.divf %184, %185 : vector<1x256xf32>
    %187 = arith.mulf %182, %182 : vector<64x256xf32>
    %cst_90 = arith.constant dense<0.000000e+00> : vector<256xf32>
    %188 = vector.multi_reduction <add>, %187, %cst_90 [0] : vector<64x256xf32> to vector<256xf32>
    %189 = vector.shape_cast %188 : vector<256xf32> to vector<1x256xf32>
    %cst_91 = arith.constant 6.400000e+01 : f32
    %190 = vector.broadcast %cst_91 : f32 to vector<1x256xf32>
    %191 = arith.divf %189, %190 : vector<1x256xf32>
    %192 = arith.mulf %186, %186 : vector<1x256xf32>
    %193 = arith.subf %191, %192 : vector<1x256xf32>
    %cst_92 = arith.constant 0.000000e+00 : f32
    %194 = vector.broadcast %cst_92 : f32 to vector<1x256xf32>
    %195 = arith.maximumf %193, %194 : vector<1x256xf32>
    %196 = vector.broadcast %186 : vector<1x256xf32> to vector<64x256xf32>
    %197 = arith.subf %182, %196 : vector<64x256xf32>
    %cst_93 = arith.constant 9.99999974E-6 : f32
    %198 = vector.broadcast %cst_93 : f32 to vector<1x256xf32>
    %199 = arith.addf %195, %198 : vector<1x256xf32>
    %200 = math.rsqrt %199 : vector<1x256xf32>
    %201 = vector.broadcast %200 : vector<1x256xf32> to vector<64x256xf32>
    %202 = arith.mulf %197, %201 : vector<64x256xf32>
    %c0_94 = arith.constant 0 : index
    %c0_95 = arith.constant 0 : index
    %203 = vector.load %arg22[%c0_94, %c0_95] : memref<1x256xf32, #tpu.memory_space<vmem>>, vector<1x256xf32>
    %204 = vector.broadcast %203 : vector<1x256xf32> to vector<64x256xf32>
    %205 = arith.mulf %204, %202 : vector<64x256xf32>
    %c0_96 = arith.constant 0 : index
    %c0_97 = arith.constant 0 : index
    %206 = vector.load %arg23[%c0_96, %c0_97] : memref<1x256xf32, #tpu.memory_space<vmem>>, vector<1x256xf32>
    %207 = vector.broadcast %206 : vector<1x256xf32> to vector<64x256xf32>
    %208 = arith.addf %205, %207 : vector<64x256xf32>
    %cst_98 = arith.constant 0.000000e+00 : f32
    %209 = vector.broadcast %cst_98 : f32 to vector<64x256xf32>
    %210 = arith.maximumf %208, %209 : vector<64x256xf32>
    %c0_99 = arith.constant 0 : index
    %c0_100 = arith.constant 0 : index
    %211 = vector.load %arg24[%c0_99, %c0_100] : memref<256x64xf32, #tpu.memory_space<vmem>>, vector<256x64xf32>
    %cst_101 = arith.constant dense<0.000000e+00> : vector<64x64xf32>
    %212 = tpu.matmul %210, %211, %cst_101 {dimension_numbers = #tpu.dot_dimension_numbers<[1], [0], [0], [1], [0, 0, 1, 1], [], []>} : vector<64x256xf32>, vector<256x64xf32>, vector<64x64xf32> -> vector<64x64xf32>
    %c0_102 = arith.constant 0 : index
    %c0_103 = arith.constant 0 : index
    %213 = vector.load %arg25[%c0_102, %c0_103] : memref<1x64xf32, #tpu.memory_space<vmem>>, vector<1x64xf32>
    %214 = vector.broadcast %213 : vector<1x64xf32> to vector<64x64xf32>
    %215 = arith.addf %212, %214 : vector<64x64xf32>
    %216 = arith.negf %215 : vector<64x64xf32>
    %217 = math.exp %216 : vector<64x64xf32>
    %cst_104 = arith.constant 1.000000e+00 : f32
    %218 = vector.broadcast %cst_104 : f32 to vector<64x64xf32>
    %219 = arith.addf %218, %217 : vector<64x64xf32>
    %220 = arith.divf %218, %219 : vector<64x64xf32>
    %221 = vector.extract_strided_slice %144 {offsets = [0, 0], sizes = [64, 1], strides = [1, 1]} : vector<64x4xf32> to vector<64x1xf32>
    %222 = vector.extract_strided_slice %220 {offsets = [0, 0], sizes = [64, 16], strides = [1, 1]} : vector<64x64xf32> to vector<64x16xf32>
    %223 = vector.broadcast %221 : vector<64x1xf32> to vector<64x16xf32>
    %224 = arith.mulf %223, %222 : vector<64x16xf32>
    %225 = vector.extract_strided_slice %144 {offsets = [0, 1], sizes = [64, 1], strides = [1, 1]} : vector<64x4xf32> to vector<64x1xf32>
    %226 = vector.extract_strided_slice %220 {offsets = [0, 16], sizes = [64, 16], strides = [1, 1]} : vector<64x64xf32> to vector<64x16xf32>
    %227 = vector.broadcast %225 : vector<64x1xf32> to vector<64x16xf32>
    %228 = arith.mulf %227, %226 : vector<64x16xf32>
    %229 = arith.addf %224, %228 : vector<64x16xf32>
    %230 = vector.extract_strided_slice %144 {offsets = [0, 2], sizes = [64, 1], strides = [1, 1]} : vector<64x4xf32> to vector<64x1xf32>
    %231 = vector.extract_strided_slice %220 {offsets = [0, 32], sizes = [64, 16], strides = [1, 1]} : vector<64x64xf32> to vector<64x16xf32>
    %232 = vector.broadcast %230 : vector<64x1xf32> to vector<64x16xf32>
    %233 = arith.mulf %232, %231 : vector<64x16xf32>
    %234 = arith.addf %229, %233 : vector<64x16xf32>
    %235 = vector.extract_strided_slice %144 {offsets = [0, 3], sizes = [64, 1], strides = [1, 1]} : vector<64x4xf32> to vector<64x1xf32>
    %236 = vector.extract_strided_slice %220 {offsets = [0, 48], sizes = [64, 16], strides = [1, 1]} : vector<64x64xf32> to vector<64x16xf32>
    %237 = vector.broadcast %235 : vector<64x1xf32> to vector<64x16xf32>
    %238 = arith.mulf %237, %236 : vector<64x16xf32>
    %239 = arith.addf %234, %238 : vector<64x16xf32>
    %240 = tpu.concatenate %239, %98, %99, %144, %220 in 1 : vector<64x16xf32>, vector<64x4xf32>, vector<64x4xf32>, vector<64x4xf32>, vector<64x64xf32> -> vector<64x92xf32>
    %c0_105 = arith.constant 0 : index
    %c0_106 = arith.constant 0 : index
    %241 = vector.load %arg26[%c0_105, %c0_106] : memref<64x92xf32, #tpu.memory_space<vmem>>, vector<64x92xf32>
    tpu.vector_store %arg26[%c0_105, %c0_106], %240 {strides = array<i32>} : memref<64x92xf32, #tpu.memory_space<vmem>>, vector<64x92xf32>,
    return
  }
}

</mosaic_0001>

<llo_original>
// kernel: pgmsu_forward.1
$region0: #{pgmsu_forward.1}
  #allocation0 [shape = 'u32[]', space=smem, size = 0x4, offset = 0x4, fixed_abs, tag = 'smem constant byte address 0x4 - core index']
  #allocation1 [shape = 'u32[144,128]{1,0:T(1,128)}', space=vmem, size = 0x12000, scoped, tag = 'internal scratch']
  %s0 = inlined_call_operand.vmem [shape: f32[64,16], index: 0, kind: input, shape index: {}]
  %s1 = inlined_call_operand.vmem [shape: f32[64,4], index: 1, kind: input, shape index: {}]
  %s2 = inlined_call_operand.vmem [shape: f32[16,256], index: 2, kind: input, shape index: {}]
  %s3 = inlined_call_operand.vmem [shape: f32[1,256], index: 3, kind: input, shape index: {}]
  %s4 = inlined_call_operand.vmem [shape: f32[1,256], index: 4, kind: input, shape index: {}]
  %s5 = inlined_call_operand.vmem [shape: f32[256,128], index: 5, kind: input, shape index: {}]
  %s6 = inlined_call_operand.vmem [shape: f32[1,128], index: 6, kind: input, shape index: {}]
  %s7 = inlined_call_operand.vmem [shape: f32[1,128], index: 7, kind: input, shape index: {}]
  %s8 = inlined_call_operand.vmem [shape: f32[128,32], index: 8, kind: input, shape index: {}]
  %s9 = inlined_call_operand.vmem [shape: f32[1,32], index: 9, kind: input, shape index: {}]
  %s10 = inlined_call_operand.vmem [shape: f32[1,32], index: 10, kind: input, shape index: {}]
  %s11 = inlined_call_operand.vmem [shape: f32[16,8], index: 11, kind: input, shape index: {}]
  %s12 = inlined_call_operand.vmem [shape: f32[1,8], index: 12, kind: input, shape index: {}]
  %s13 = inlined_call_operand.vmem [shape: f32[16,16], index: 13, kind: input, shape index: {}]
  %s14 = inlined_call_operand.vmem [shape: f32[1,16], index: 14, kind: input, shape index: {}]
  %s15 = inlined_call_operand.vmem [shape: f32[1,16], index: 15, kind: input, shape index: {}]
  %s16 = inlined_call_operand.vmem [shape: f32[16,4], index: 16, kind: input, shape index: {}]
  %s17 = inlined_call_operand.vmem [shape: f32[1,4], index: 17, kind: input, shape index: {}]
  %s18 = inlined_call_operand.vmem [shape: f32[4,16], index: 18, kind: input, shape index: {}]
  %s19 = inlined_call_operand.vmem [shape: f32[1,16], index: 19, kind: input, shape index: {}]
  %s20 = inlined_call_operand.vmem [shape: f32[1,16], index: 20, kind: input, shape index: {}]
  %s21 = inlined_call_operand.vmem [shape: f32[16,256], index: 21, kind: input, shape index: {}]
  %s22 = inlined_call_operand.vmem [shape: f32[1,256], index: 22, kind: input, shape index: {}]
  %s23 = inlined_call_operand.vmem [shape: f32[1,256], index: 23, kind: input, shape index: {}]
  %s24 = inlined_call_operand.vmem [shape: f32[256,64], index: 24, kind: input, shape index: {}]
  %s25 = inlined_call_operand.vmem [shape: f32[1,64], index: 25, kind: input, shape index: {}]
  %s26 = inlined_call_operand.vmem [shape: f32[64,92], index: 26, kind: output, shape index: {}]
  %s27 = sld [smem:[#allocation0]]
  $region114: #{pgmsu_forward.1} parent=0
    _
  %s29 = ssub.s32 1, %s27
  %s30 = scalar_select 0, %s29, %s27
  // Predicated region
  $region2: #{pgmsu_forward.1} parent=0 // pred_check
    _
  $region3: #{pgmsu_forward.1} parent=0 // pred_check_branch
    %32 = sbr.rel (0) target = $region5
  $region4: #{pgmsu_forward.1} parent=0 // pred_region
    _
  $region5: #{pgmsu_forward.1} parent=0 // pred_fallthru
    _
  // Predicated region
  $region6: #{pgmsu_forward.1} parent=0 // pred_check
    _
  $region7: #{pgmsu_forward.1} parent=0 // pred_check_branch
    %34 = sbr.rel (0) target = $region9
  $region8: #{pgmsu_forward.1} parent=0 // pred_region
    _
  $region9: #{pgmsu_forward.1} parent=0 // pred_fallthru
    _
  // Predicated region
  $region10: #{pgmsu_forward.1} parent=0 // pred_check
    _
  $region11: #{pgmsu_forward.1} parent=0 // pred_check_branch
    %36 = sbr.rel (0) target = $region13
  $region12: #{pgmsu_forward.1} parent=0 // pred_region
    _
  $region13: #{pgmsu_forward.1} parent=0 // pred_fallthru
    _
  // Predicated region
  $region14: #{pgmsu_forward.1} parent=0 // pred_check
    _
  $region15: #{pgmsu_forward.1} parent=0 // pred_check_branch
    %38 = sbr.rel (0) target = $region17
  $region16: #{pgmsu_forward.1} parent=0 // pred_region
    _
  $region17: #{pgmsu_forward.1} parent=0 // pred_fallthru
    _
  // Predicated region
  $region18: #{pgmsu_forward.1} parent=0 // pred_check
    _
  $region19: #{pgmsu_forward.1} parent=0 // pred_check_branch
    %40 = sbr.rel (0) target = $region21
  $region20: #{pgmsu_forward.1} parent=0 // pred_region
    _
  $region21: #{pgmsu_forward.1} parent=0 // pred_fallthru
    _
  // Predicated region
  $region22: #{pgmsu_forward.1} parent=0 // pred_check
    _
  $region23: #{pgmsu_forward.1} parent=0 // pred_check_branch
    %42 = sbr.rel (0) target = $region25
  $region24: #{pgmsu_forward.1} parent=0 // pred_region
    _
  $region25: #{pgmsu_forward.1} parent=0 // pred_fallthru
    _
  // Predicated region
  $region26: #{pgmsu_forward.1} parent=0 // pred_check
    _
  $region27: #{pgmsu_forward.1} parent=0 // pred_check_branch
    %44 = sbr.rel (0) target = $region29
  $region28: #{pgmsu_forward.1} parent=0 // pred_region
    _
  $region29: #{pgmsu_forward.1} parent=0 // pred_fallthru
    _
  // Predicated region
  $region30: #{pgmsu_forward.1} parent=0 // pred_check
    _
  $region31: #{pgmsu_forward.1} parent=0 // pred_check_branch
    %46 = sbr.rel (0) target = $region33
  $region32: #{pgmsu_forward.1} parent=0 // pred_region
    _
  $region33: #{pgmsu_forward.1} parent=0 // pred_fallthru
    _
  // Predicated region
  $region34: #{pgmsu_forward.1} parent=0 // pred_check
    _
  $region35: #{pgmsu_forward.1} parent=0 // pred_check_branch
    %48 = sbr.rel (0) target = $region37
  $region36: #{pgmsu_forward.1} parent=0 // pred_region
    _
  $region37: #{pgmsu_forward.1} parent=0 // pred_fallthru
    _
  // Predicated region
  $region38: #{pgmsu_forward.1} parent=0 // pred_check
    _
  $region39: #{pgmsu_forward.1} parent=0 // pred_check_branch
    %50 = sbr.rel (0) target = $region41
  $region40: #{pgmsu_forward.1} parent=0 // pred_region
    _
  $region41: #{pgmsu_forward.1} parent=0 // pred_fallthru
    _
  // Predicated region
  $region42: #{pgmsu_forward.1} parent=0 // pred_check
    _
  $region43: #{pgmsu_forward.1} parent=0 // pred_check_branch
    %52 = sbr.rel (0) target = $region45
  $region44: #{pgmsu_forward.1} parent=0 // pred_region
    _
  $region45: #{pgmsu_forward.1} parent=0 // pred_fallthru
    _
  // Predicated region
  $region46: #{pgmsu_forward.1} parent=0 // pred_check
    _
  $region47: #{pgmsu_forward.1} parent=0 // pred_check_branch
    %54 = sbr.rel (0) target = $region49
  $region48: #{pgmsu_forward.1} parent=0 // pred_region
    _
  $region49: #{pgmsu_forward.1} parent=0 // pred_fallthru
    _
  // Predicated region
  $region50: #{pgmsu_forward.1} parent=0 // pred_check
    _
  $region51: #{pgmsu_forward.1} parent=0 // pred_check_branch
    %56 = sbr.rel (0) target = $region53
  $region52: #{pgmsu_forward.1} parent=0 // pred_region
    _
  $region53: #{pgmsu_forward.1} parent=0 // pred_fallthru
    _
  // Predicated region
  $region54: #{pgmsu_forward.1} parent=0 // pred_check
    _
  $region55: #{pgmsu_forward.1} parent=0 // pred_check_branch
    %58 = sbr.rel (0) target = $region57
  $region56: #{pgmsu_forward.1} parent=0 // pred_region
    _
  $region57: #{pgmsu_forward.1} parent=0 // pred_fallthru
    _
  // Predicated region
  $region58: #{pgmsu_forward.1} parent=0 // pred_check
    _
  $region59: #{pgmsu_forward.1} parent=0 // pred_check_branch
    %60 = sbr.rel (0) target = $region61
  $region60: #{pgmsu_forward.1} parent=0 // pred_region
    _
  $region61: #{pgmsu_forward.1} parent=0 // pred_fallthru
    _
  // Predicated region
  $region62: #{pgmsu_forward.1} parent=0 // pred_check
    _
  $region63: #{pgmsu_forward.1} parent=0 // pred_check_branch
    %62 = sbr.rel (0) target = $region65
  $region64: #{pgmsu_forward.1} parent=0 // pred_region
    _
  $region65: #{pgmsu_forward.1} parent=0 // pred_fallthru
    _
  // Predicated region
  $region66: #{pgmsu_forward.1} parent=0 // pred_check
    _
  $region67: #{pgmsu_forward.1} parent=0 // pred_check_branch
    %64 = sbr.rel (0) target = $region69
  $region68: #{pgmsu_forward.1} parent=0 // pred_region
    _
  $region69: #{pgmsu_forward.1} parent=0 // pred_fallthru
    _
  // Predicated region
  $region70: #{pgmsu_forward.1} parent=0 // pred_check
    _
  $region71: #{pgmsu_forward.1} parent=0 // pred_check_branch
    %66 = sbr.rel (0) target = $region73
  $region72: #{pgmsu_forward.1} parent=0 // pred_region
    _
  $region73: #{pgmsu_forward.1} parent=0 // pred_fallthru
    _
  // Predicated region
  $region74: #{pgmsu_forward.1} parent=0 // pred_check
    _
  $region75: #{pgmsu_forward.1} parent=0 // pred_check_branch
    %68 = sbr.rel (0) target = $region77
  $region76: #{pgmsu_forward.1} parent=0 // pred_region
    _
  $region77: #{pgmsu_forward.1} parent=0 // pred_fallthru
    _
  // Predicated region
  $region78: #{pgmsu_forward.1} parent=0 // pred_check
    _
  $region79: #{pgmsu_forward.1} parent=0 // pred_check_branch
    %70 = sbr.rel (0) target = $region81
  $region80: #{pgmsu_forward.1} parent=0 // pred_region
    _
  $region81: #{pgmsu_forward.1} parent=0 // pred_fallthru
    _
  // Predicated region
  $region82: #{pgmsu_forward.1} parent=0 // pred_check
    _
  $region83: #{pgmsu_forward.1} parent=0 // pred_check_branch
    %72 = sbr.rel (0) target = $region85
  $region84: #{pgmsu_forward.1} parent=0 // pred_region
    _
  $region85: #{pgmsu_forward.1} parent=0 // pred_fallthru
    _
  // Predicated region
  $region86: #{pgmsu_forward.1} parent=0 // pred_check
    _
  $region87: #{pgmsu_forward.1} parent=0 // pred_check_branch
    %74 = sbr.rel (0) target = $region89
  $region88: #{pgmsu_forward.1} parent=0 // pred_region
    _
  $region89: #{pgmsu_forward.1} parent=0 // pred_fallthru
    _
  // Predicated region
  $region90: #{pgmsu_forward.1} parent=0 // pred_check
    _
  $region91: #{pgmsu_forward.1} parent=0 // pred_check_branch
    %76 = sbr.rel (0) target = $region93
  $region92: #{pgmsu_forward.1} parent=0 // pred_region
    _
  $region93: #{pgmsu_forward.1} parent=0 // pred_fallthru
    _
  // Predicated region
  $region94: #{pgmsu_forward.1} parent=0 // pred_check
    _
  $region95: #{pgmsu_forward.1} parent=0 // pred_check_branch
    %78 = sbr.rel (0) target = $region97
  $region96: #{pgmsu_forward.1} parent=0 // pred_region
    _
  $region97: #{pgmsu_forward.1} parent=0 // pred_fallthru
    _
  // Predicated region
  $region98: #{pgmsu_forward.1} parent=0 // pred_check
    _
  $region99: #{pgmsu_forward.1} parent=0 // pred_check_branch
    %80 = sbr.rel (0) target = $region101
  $region100: #{pgmsu_forward.1} parent=0 // pred_region
    _
  $region101: #{pgmsu_forward.1} parent=0 // pred_fallthru
    _
  // Predicated region
  $region102: #{pgmsu_forward.1} parent=0 // pred_check
    _
  $region103: #{pgmsu_forward.1} parent=0 // pred_check_branch
    %82 = sbr.rel (0) target = $region105
  $region104: #{pgmsu_forward.1} parent=0 // pred_region
    _
  $region105: #{pgmsu_forward.1} parent=0 // pred_fallthru
    _
  %v83 = vld [vmem:[%s0] sm:$0xff]
  %v84 = vld [vmem:[%s0 + $0x8] sm:$0xff]
  %v85 = vld [vmem:[%s0 + $0x10] sm:$0xff]
  %v86 = vld [vmem:[%s0 + $0x18] sm:$0xff]
  %v87 = vld [vmem:[%s0 + $0x20] sm:$0xff]
  %v88 = vld [vmem:[%s0 + $0x28] sm:$0xff]
  %v89 = vld [vmem:[%s0 + $0x30] sm:$0xff]
  %v90 = vld [vmem:[%s0 + $0x38] sm:$0xff]
  %v91 = vld [vmem:[%s2] sm:$0xff]
  %v92 = vld [vmem:[%s2 + $0x8] sm:$0xff]
  %v93 = vld [vmem:[%s2 + $0x10] sm:$0xff]
  %v94 = vld [vmem:[%s2 + $0x18] sm:$0xff]
  %vm95 = vcmask 130048
  %v97 = vsel %vm95, %v83, 0
  %v100 = vsel %vm95, %v84, 0
  %v103 = vsel %vm95, %v85, 0
  %v106 = vsel %vm95, %v86, 0
  %v109 = vsel %vm95, %v87, 0
  %v112 = vsel %vm95, %v88, 0
  %v115 = vsel %vm95, %v89, 0
  %v118 = vsel %vm95, %v90, 0
  %120 = vmatprep.subr.mxu0 %v92
  %121 = vmatpush1.msra.mxu0 %v91
  %122 = vmatprep.subr.mxu0 %v94
  %123 = vmatpush1.msra.mxu0 %v93
  %124 = vmatprep.subr.mxu0 0.0
  %125 = vmatpush1.msra.mxu0 0.0
  %126 = vmatprep.subr.mxu0 0.0
  %127 = vmatpush1.msra.mxu0 0.0
  %128 = vmatprep.subr.mxu0 0.0
  %129 = vmatpush1.msra.mxu0 0.0
  %130 = vmatprep.subr.mxu0 0.0
  %131 = vmatpush1.msra.mxu0 0.0
  %132 = vmatprep.subr.mxu0 0.0
  %133 = vmatpush1.msra.mxu0 0.0
  %134 = vmatprep.subr.mxu0 0.0
  %135 = vmatpush1.msra.mxu0 0.0
  %136 = vmatprep.subr.mxu0 0.0
  %137 = vmatpush1.msra.mxu0 0.0
  %138 = vmatprep.subr.mxu0 0.0
  %139 = vmatpush1.msra.mxu0 0.0
  %140 = vmatprep.subr.mxu0 0.0
  %141 = vmatpush1.msra.mxu0 0.0
  %142 = vmatprep.subr.mxu0 0.0
  %143 = vmatpush1.msra.mxu0 0.0
  %144 = vmatprep.subr.mxu0 0.0
  %145 = vmatpush1.msra.mxu0 0.0
  %146 = vmatprep.subr.mxu0 0.0
  %147 = vmatpush1.msra.mxu0 0.0
  %148 = vmatprep.subr.mxu0 0.0
  %149 = vmatpush1.msra.mxu0 0.0
  %150 = vmatprep.subr.mxu0 0.0
  %151 = vmatpush1.msra.mxu0 0.0
  %152 = vmatprep.subr.mxu0 0.0
  %153 = vmatpush1.msra.mxu0 0.0
  %154 = vmatprep.subr.mxu0 0.0
  %155 = vmatpush1.msra.mxu0 0.0
  %156 = vmatprep.subr.mxu0 0.0
  %157 = vmatpush1.msra.mxu0 0.0
  %158 = vmatprep.subr.mxu0 0.0
  %159 = vmatpush1.msra.mxu0 0.0
  %160 = vmatprep.subr.mxu0 0.0
  %161 = vmatpush1.msra.mxu0 0.0
  %162 = vmatprep.subr.mxu0 0.0
  %163 = vmatpush1.msra.mxu0 0.0
  %164 = vmatprep.subr.mxu0 0.0
  %165 = vmatpush1.msra.mxu0 0.0
  %166 = vmatprep.subr.mxu0 0.0
  %167 = vmatpush1.msra.mxu0 0.0
  %168 = vmatprep.subr.mxu0 0.0
  %169 = vmatpush1.msra.mxu0 0.0
  %170 = vmatprep.subr.mxu0 0.0
  %171 = vmatpush1.msra.mxu0 0.0
  %172 = vmatprep.subr.mxu0 0.0
  %173 = vmatpush1.msra.mxu0 0.0
  %174 = vmatprep.subr.mxu0 0.0
  %175 = vmatpush1.msra.mxu0 0.0
  %176 = vmatprep.subr.mxu0 0.0
  %177 = vmatpush1.msra.mxu0 0.0
  %178 = vmatprep.subr.mxu0 0.0
  %179 = vmatpush1.msra.mxu0 0.0
  %180 = vmatprep.subr.mxu0 0.0
  %181 = vmatpush1.msra.mxu0 0.0
  %182 = vmatprep.subr.mxu0 0.0
  %183 = vmatpush1.msra.mxu0 0.0
  %184 = vmatprep.mubr.f32.mxu0 0.0
  %185 = vmatmul.mubr.f32.gmra.mrb[0].mxu0 %v97
  %v186 = vpop.f32.mrb[0].mxu0
  %v187 = vadd.f32 0.0, %v186
  %v188 = vpop.f32.mrb[0].mxu0
  %v189 = vadd.f32 0.0, %v188
  %190 = vmatprep.mubr.f32.mxu0 0.0
  %191 = vmatmul.mubr.f32.gmra.mrb[0].mxu0 %v100
  %v192 = vpop.f32.mrb[0].mxu0
  %v193 = vadd.f32 0.0, %v192
  %v194 = vpop.f32.mrb[0].mxu0
  %v195 = vadd.f32 0.0, %v194
  %196 = vmatprep.mubr.f32.mxu0 0.0
  %197 = vmatmul.mubr.f32.gmra.mrb[0].mxu0 %v103
  %v198 = vpop.f32.mrb[0].mxu0
  %v199 = vadd.f32 0.0, %v198
  %v200 = vpop.f32.mrb[0].mxu0
  %v201 = vadd.f32 0.0, %v200
  %202 = vmatprep.mubr.f32.mxu0 0.0
  %203 = vmatmul.mubr.f32.gmra.mrb[0].mxu0 %v106
  %v204 = vpop.f32.mrb[0].mxu0
  %v205 = vadd.f32 0.0, %v204
  %v206 = vpop.f32.mrb[0].mxu0
  %v207 = vadd.f32 0.0, %v206
  %208 = vmatprep.mubr.f32.mxu0 0.0
  %209 = vmatmul.mubr.f32.gmra.mrb[0].mxu0 %v109
  %v210 = vpop.f32.mrb[0].mxu0
  %v211 = vadd.f32 0.0, %v210
  %v212 = vpop.f32.mrb[0].mxu0
  %v213 = vadd.f32 0.0, %v212
  %214 = vmatprep.mubr.f32.mxu0 0.0
  %215 = vmatmul.mubr.f32.gmra.mrb[0].mxu0 %v112
  %v216 = vpop.f32.mrb[0].mxu0
  %v217 = vadd.f32 0.0, %v216
  %v218 = vpop.f32.mrb[0].mxu0
  %v219 = vadd.f32 0.0, %v218
  %220 = vmatprep.mubr.f32.mxu0 0.0
  %221 = vmatmul.mubr.f32.gmra.mrb[0].mxu0 %v115
  %v222 = vpop.f32.mrb[0].mxu0
  %v223 = vadd.f32 0.0, %v222
  %v224 = vpop.f32.mrb[0].mxu0
  %v225 = vadd.f32 0.0, %v224
  %226 = vmatprep.mubr.f32.mxu0 0.0
  %227 = vmatmul.mubr.f32.gmra.mrb[0].mxu0 %v118
  %v228 = vpop.f32.mrb[0].mxu0
  %v229 = vadd.f32 0.0, %v228
  %v230 = vpop.f32.mrb[0].mxu0
  %v231 = vadd.f32 0.0, %v230
  %232 = vdwg.mxu0
  %v233 = vadd.f32 %v187, %v193
  %v234 = vadd.f32 %v233, %v199
  %v235 = vadd.f32 %v234, %v205
  %v236 = vadd.f32 %v235, %v211
  %v237 = vadd.f32 %v236, %v217
  %v238 = vadd.f32 %v237, %v223
  %v239 = vadd.f32 %v238, %v229
  %v240 = vrot.slane %v239, 4
  %v241 = vadd.f32 %v239, %v240
  %v242 = vrot.slane %v241, 2
  %v243 = vadd.f32 %v241, %v242
  %v244 = vrot.slane %v243, 1
  %v245 = vadd.f32 %v243, %v244
  %v246 = vadd.f32 %v189, %v195
  %v247 = vadd.f32 %v246, %v201
  %v248 = vadd.f32 %v247, %v207
  %v249 = vadd.f32 %v248, %v213
  %v250 = vadd.f32 %v249, %v219
  %v251 = vadd.f32 %v250, %v225
  %v252 = vadd.f32 %v251, %v231
  %v253 = vrot.slane %v252, 4
  %v254 = vadd.f32 %v252, %v253
  %v255 = vrot.slane %v254, 2
  %v256 = vadd.f32 %v254, %v255
  %v257 = vrot.slane %v256, 1
  %v258 = vadd.f32 %v256, %v257
  %v259 = vrcp.pop 64.0
  %v260 = vmul.f32 %v245, %v259
  %v261 = vmul.f32 %v258, %v259
  %v262 = vmul.f32 %v187, %v187
  %v263 = vmul.f32 %v189, %v189
  %v264 = vmul.f32 %v193, %v193
  %v265 = vmul.f32 %v195, %v195
  %v266 = vmul.f32 %v199, %v199
  %v267 = vmul.f32 %v201, %v201
  %v268 = vmul.f32 %v205, %v205
  %v269 = vmul.f32 %v207, %v207
  %v270 = vmul.f32 %v211, %v211
  %v271 = vmul.f32 %v213, %v213
  %v272 = vmul.f32 %v217, %v217
  %v273 = vmul.f32 %v219, %v219
  %v274 = vmul.f32 %v223, %v223
  %v275 = vmul.f32 %v225, %v225
  %v276 = vmul.f32 %v229, %v229
  %v277 = vmul.f32 %v231, %v231
  %v278 = vadd.f32 %v262, %v264
  %v279 = vadd.f32 %v278, %v266
  %v280 = vadd.f32 %v279, %v268
  %v281 = vadd.f32 %v280, %v270
  %v282 = vadd.f32 %v281, %v272
  %v283 = vadd.f32 %v282, %v274
  %v284 = vadd.f32 %v283, %v276
  %v285 = vrot.slane %v284, 4
  %v286 = vadd.f32 %v284, %v285
  %v287 = vrot.slane %v286, 2
  %v288 = vadd.f32 %v286, %v287
  %v289 = vrot.slane %v288, 1
  %v290 = vadd.f32 %v288, %v289
  %v291 = vadd.f32 %v263, %v265
  %v292 = vadd.f32 %v291, %v267
  %v293 = vadd.f32 %v292, %v269
  %v294 = vadd.f32 %v293, %v271
  %v295 = vadd.f32 %v294, %v273
  %v296 = vadd.f32 %v295, %v275
  %v297 = vadd.f32 %v296, %v277
  %v298 = vrot.slane %v297, 4
  %v299 = vadd.f32 %v297, %v298
  %v300 = vrot.slane %v299, 2
  %v301 = vadd.f32 %v299, %v300
  %v302 = vrot.slane %v301, 1
  %v303 = vadd.f32 %v301, %v302
  %v304 = vmul.f32 %v290, %v259
  %v305 = vmul.f32 %v303, %v259
  %v306 = vmul.f32 %v260, %v260
  %v307 = vmul.f32 %v261, %v261
  %v308 = vsub.f32 %v304, %v306
  %v309 = vsub.f32 %v305, %v307
  %v310 = vmax.f32 %v308, 0.0
  %v311 = vmax.f32 %v309, 0.0
  %v312 = vsub.f32 %v187, %v260
  %v313 = vsub.f32 %v189, %v261
  %v314 = vsub.f32 %v193, %v260
  %v315 = vsub.f32 %v195, %v261
  %v316 = vsub.f32 %v199, %v260
  %v317 = vsub.f32 %v201, %v261
  %v318 = vsub.f32 %v205, %v260
  %v319 = vsub.f32 %v207, %v261
  %v320 = vsub.f32 %v211, %v260
  %v321 = vsub.f32 %v213, %v261
  %v322 = vsub.f32 %v217, %v260
  %v323 = vsub.f32 %v219, %v261
  %v324 = vsub.f32 %v223, %v260
  %v325 = vsub.f32 %v225, %v261
  %v326 = vsub.f32 %v229, %v260
  %v327 = vsub.f32 %v231, %v261
  %v328 = vadd.f32 %v310, 1e-05
  %v329 = vadd.f32 %v311, 1e-05
  %v330 = vrsqrt.pop %v328
  %v331 = vrsqrt.pop %v329
  %v332 = vmul.f32 %v312, %v330
  %v333 = vmul.f32 %v313, %v331
  %v334 = vmul.f32 %v314, %v330
  %v335 = vmul.f32 %v315, %v331
  %v336 = vmul.f32 %v316, %v330
  %v337 = vmul.f32 %v317, %v331
  %v338 = vmul.f32 %v318, %v330
  %v339 = vmul.f32 %v319, %v331
  %v340 = vmul.f32 %v320, %v330
  %v341 = vmul.f32 %v321, %v331
  %v342 = vmul.f32 %v322, %v330
  %v343 = vmul.f32 %v323, %v331
  %v344 = vmul.f32 %v324, %v330
  %v345 = vmul.f32 %v325, %v331
  %v346 = vmul.f32 %v326, %v330
  %v347 = vmul.f32 %v327, %v331
  %v348 = vld [vmem:[%s3] sm:$0x3]
  %v350 = vlaneseq
  %v351 = vshrl.u32 %v350, 7
  %v352 = vsub.s32 0, %v351
  %v353 = vrot.slane %v348, %v352
  %v354 = vlaneseq
  %v355 = vshrl.u32 %v354, 7
  %v356 = vsub.s32 1, %v355
  %v357 = vrot.slane %v348, %v356
  %v360 = vmul.f32 %v353, %v332
  %v361 = vmul.f32 %v357, %v333
  %v362 = vmul.f32 %v353, %v334
  %v363 = vmul.f32 %v357, %v335
  %v364 = vmul.f32 %v353, %v336
  %v365 = vmul.f32 %v357, %v337
  %v366 = vmul.f32 %v353, %v338
  %v367 = vmul.f32 %v357, %v339
  %v368 = vmul.f32 %v353, %v340
  %v369 = vmul.f32 %v357, %v341
  %v370 = vmul.f32 %v353, %v342
  %v371 = vmul.f32 %v357, %v343
  %v372 = vmul.f32 %v353, %v344
  %v373 = vmul.f32 %v357, %v345
  %v374 = vmul.f32 %v353, %v346
  %v375 = vmul.f32 %v357, %v347
  %v376 = vld [vmem:[%s4] sm:$0x3]
  %v378 = vlaneseq
  %v379 = vshrl.u32 %v378, 7
  %v380 = vsub.s32 0, %v379
  %v381 = vrot.slane %v376, %v380
  %v382 = vlaneseq
  %v383 = vshrl.u32 %v382, 7
  %v384 = vsub.s32 1, %v383
  %v385 = vrot.slane %v376, %v384
  %v388 = vadd.f32 %v360, %v381
  %v389 = vadd.f32 %v361, %v385
  %v390 = vadd.f32 %v362, %v381
  %v391 = vadd.f32 %v363, %v385
  %v392 = vadd.f32 %v364, %v381
  %v393 = vadd.f32 %v365, %v385
  %v394 = vadd.f32 %v366, %v381
  %v395 = vadd.f32 %v367, %v385
  %v396 = vadd.f32 %v368, %v381
  %v397 = vadd.f32 %v369, %v385
  %v398 = vadd.f32 %v370, %v381
  %v399 = vadd.f32 %v371, %v385
  %v400 = vadd.f32 %v372, %v381
  %v401 = vadd.f32 %v373, %v385
  %v402 = vadd.f32 %v374, %v381
  %v403 = vadd.f32 %v375, %v385
  %v404 = vmax.f32 %v388, 0.0
  %v405 = vmax.f32 %v389, 0.0
  %v406 = vmax.f32 %v390, 0.0
  %v407 = vmax.f32 %v391, 0.0
  %v408 = vmax.f32 %v392, 0.0
  %v409 = vmax.f32 %v393, 0.0
  %v410 = vmax.f32 %v394, 0.0
  %v411 = vmax.f32 %v395, 0.0
  %v412 = vmax.f32 %v396, 0.0
  %v413 = vmax.f32 %v397, 0.0
  %v414 = vmax.f32 %v398, 0.0
  %v415 = vmax.f32 %v399, 0.0
  %v416 = vmax.f32 %v400, 0.0
  %v417 = vmax.f32 %v401, 0.0
  %v418 = vmax.f32 %v402, 0.0
  %v419 = vmax.f32 %v403, 0.0
  %v420 = vld [vmem:[%s5] sm:$0xff]
  %v421 = vld [vmem:[%s5 + $0x8] sm:$0xff]
  %v422 = vld [vmem:[%s5 + $0x10] sm:$0xff]
  %v423 = vld [vmem:[%s5 + $0x18] sm:$0xff]
  %v424 = vld [vmem:[%s5 + $0x20] sm:$0xff]
  %v425 = vld [vmem:[%s5 + $0x28] sm:$0xff]
  %v426 = vld [vmem:[%s5 + $0x30] sm:$0xff]
  %v427 = vld [vmem:[%s5 + $0x38] sm:$0xff]
  %v428 = vld [vmem:[%s5 + $0x40] sm:$0xff]
  %v429 = vld [vmem:[%s5 + $0x48] sm:$0xff]
  %v430 = vld [vmem:[%s5 + $0x50] sm:$0xff]
  %v431 = vld [vmem:[%s5 + $0x58] sm:$0xff]
  %v432 = vld [vmem:[%s5 + $0x60] sm:$0xff]
  %v433 = vld [vmem:[%s5 + $0x68] sm:$0xff]
  %v434 = vld [vmem:[%s5 + $0x70] sm:$0xff]
  %v435 = vld [vmem:[%s5 + $0x78] sm:$0xff]
  %v436 = vld [vmem:[%s5 + $0x80] sm:$0xff]
  %v437 = vld [vmem:[%s5 + $0x88] sm:$0xff]
  %v438 = vld [vmem:[%s5 + $0x90] sm:$0xff]
  %v439 = vld [vmem:[%s5 + $0x98] sm:$0xff]
  %v440 = vld [vmem:[%s5 + $0xa0] sm:$0xff]
  %v441 = vld [vmem:[%s5 + $0xa8] sm:$0xff]
  %v442 = vld [vmem:[%s5 + $0xb0] sm:$0xff]
  %v443 = vld [vmem:[%s5 + $0xb8] sm:$0xff]
  %v444 = vld [vmem:[%s5 + $0xc0] sm:$0xff]
  %v445 = vld [vmem:[%s5 + $0xc8] sm:$0xff]
  %v446 = vld [vmem:[%s5 + $0xd0] sm:$0xff]
  %v447 = vld [vmem:[%s5 + $0xd8] sm:$0xff]
  %v448 = vld [vmem:[%s5 + $0xe0] sm:$0xff]
  %v449 = vld [vmem:[%s5 + $0xe8] sm:$0xff]
  %v450 = vld [vmem:[%s5 + $0xf0] sm:$0xff]
  %v451 = vld [vmem:[%s5 + $0xf8] sm:$0xff]
  %452 = vmatprep.subr.mxu0 0.0
  %453 = vmatpush1.msra.mxu0 %v420
  %454 = vmatprep.subr.mxu0 0.0
  %455 = vmatpush1.msra.mxu0 %v421
  %456 = vmatprep.subr.mxu0 0.0
  %457 = vmatpush1.msra.mxu0 %v422
  %458 = vmatprep.subr.mxu0 0.0
  %459 = vmatpush1.msra.mxu0 %v423
  %460 = vmatprep.subr.mxu0 0.0
  %461 = vmatpush1.msra.mxu0 %v424
  %462 = vmatprep.subr.mxu0 0.0
  %463 = vmatpush1.msra.mxu0 %v425
  %464 = vmatprep.subr.mxu0 0.0
  %465 = vmatpush1.msra.mxu0 %v426
  %466 = vmatprep.subr.mxu0 0.0
  %467 = vmatpush1.msra.mxu0 %v427
  %468 = vmatprep.subr.mxu0 0.0
  %469 = vmatpush1.msra.mxu0 %v428
  %470 = vmatprep.subr.mxu0 0.0
  %471 = vmatpush1.msra.mxu0 %v429
  %472 = vmatprep.subr.mxu0 0.0
  %473 = vmatpush1.msra.mxu0 %v430
  %474 = vmatprep.subr.mxu0 0.0
  %475 = vmatpush1.msra.mxu0 %v431
  %476 = vmatprep.subr.mxu0 0.0
  %477 = vmatpush1.msra.mxu0 %v432
  %478 = vmatprep.subr.mxu0 0.0
  %479 = vmatpush1.msra.mxu0 %v433
  %480 = vmatprep.subr.mxu0 0.0
  %481 = vmatpush1.msra.mxu0 %v434
  %482 = vmatprep.subr.mxu0 0.0
  %483 = vmatpush1.msra.mxu0 %v435
  %484 = vmatprep.subr.mxu0 0.0
  %485 = vmatpush1.msra.mxu0 %v436
  %486 = vmatprep.subr.mxu0 0.0
  %487 = vmatpush1.msra.mxu0 %v437
  %488 = vmatprep.subr.mxu0 0.0
  %489 = vmatpush1.msra.mxu0 %v438
  %490 = vmatprep.subr.mxu0 0.0
  %491 = vmatpush1.msra.mxu0 %v439
  %492 = vmatprep.subr.mxu0 0.0
  %493 = vmatpush1.msra.mxu0 %v440
  %494 = vmatprep.subr.mxu0 0.0
  %495 = vmatpush1.msra.mxu0 %v441
  %496 = vmatprep.subr.mxu0 0.0
  %497 = vmatpush1.msra.mxu0 %v442
  %498 = vmatprep.subr.mxu0 0.0
  %499 = vmatpush1.msra.mxu0 %v443
  %500 = vmatprep.subr.mxu0 0.0
  %501 = vmatpush1.msra.mxu0 %v444
  %502 = vmatprep.subr.mxu0 0.0
  %503 = vmatpush1.msra.mxu0 %v445
  %504 = vmatprep.subr.mxu0 0.0
  %505 = vmatpush1.msra.mxu0 %v446
  %506 = vmatprep.subr.mxu0 0.0
  %507 = vmatpush1.msra.mxu0 %v447
  %508 = vmatprep.subr.mxu0 0.0
  %509 = vmatpush1.msra.mxu0 %v448
  %510 = vmatprep.subr.mxu0 0.0
  %511 = vmatpush1.msra.mxu0 %v449
  %512 = vmatprep.subr.mxu0 0.0
  %513 = vmatpush1.msra.mxu0 %v450
  %514 = vmatprep.subr.mxu0 0.0
  %515 = vmatpush1.msra.mxu0 %v451
  %516 = vmatprep.mubr.f32.mxu0 %v405
  %517 = vmatmul.mubr.f32.gmra.mrb[0].mxu0 %v404
  %v518 = vpop.f32.mrb[0].mxu0
  %v519 = vadd.f32 0.0, %v518
  %v520 = vpop.f32.mrb[0].mxu0
  %521 = vmatprep.mubr.f32.mxu0 %v407
  %522 = vmatmul.mubr.f32.gmra.mrb[0].mxu0 %v406
  %v523 = vpop.f32.mrb[0].mxu0
  %v524 = vadd.f32 0.0, %v523
  %v525 = vpop.f32.mrb[0].mxu0
  %526 = vmatprep.mubr.f32.mxu0 %v409
  %527 = vmatmul.mubr.f32.gmra.mrb[0].mxu0 %v408
  %v528 = vpop.f32.mrb[0].mxu0
  %v529 = vadd.f32 0.0, %v528
  %v530 = vpop.f32.mrb[0].mxu0
  %531 = vmatprep.mubr.f32.mxu0 %v411
  %532 = vmatmul.mubr.f32.gmra.mrb[0].mxu0 %v410
  %v533 = vpop.f32.mrb[0].mxu0
  %v534 = vadd.f32 0.0, %v533
  %v535 = vpop.f32.mrb[0].mxu0
  %536 = vmatprep.mubr.f32.mxu0 %v413
  %537 = vmatmul.mubr.f32.gmra.mrb[0].mxu0 %v412
  %v538 = vpop.f32.mrb[0].mxu0
  %v539 = vadd.f32 0.0, %v538
  %v540 = vpop.f32.mrb[0].mxu0
  %541 = vmatprep.mubr.f32.mxu0 %v415
  %542 = vmatmul.mubr.f32.gmra.mrb[0].mxu0 %v414
  %v543 = vpop.f32.mrb[0].mxu0
  %v544 = vadd.f32 0.0, %v543
  %v545 = vpop.f32.mrb[0].mxu0
  %546 = vmatprep.mubr.f32.mxu0 %v417
  %547 = vmatmul.mubr.f32.gmra.mrb[0].mxu0 %v416
  %v548 = vpop.f32.mrb[0].mxu0
  %v549 = vadd.f32 0.0, %v548
  %v550 = vpop.f32.mrb[0].mxu0
  %551 = vmatprep.mubr.f32.mxu0 %v419
  %552 = vmatmul.mubr.f32.gmra.mrb[0].mxu0 %v418
  %v553 = vpop.f32.mrb[0].mxu0
  %v554 = vadd.f32 0.0, %v553
  %v555 = vpop.f32.mrb[0].mxu0
  %556 = vdwg.mxu0
  %v557 = vadd.f32 %v519, %v524
  %v558 = vadd.f32 %v557, %v529
  %v559 = vadd.f32 %v558, %v534
  %v560 = vadd.f32 %v559, %v539
  %v561 = vadd.f32 %v560, %v544
  %v562 = vadd.f32 %v561, %v549
  %v563 = vadd.f32 %v562, %v554
  %v564 = vrot.slane %v563, 4
  %v565 = vadd.f32 %v563, %v564
  %v566 = vrot.slane %v565, 2
  %v567 = vadd.f32 %v565, %v566
  %v568 = vrot.slane %v567, 1
  %v569 = vadd.f32 %v567, %v568
  %v570 = vmul.f32 %v569, %v259
  %v571 = vmul.f32 %v519, %v519
  %v572 = vmul.f32 %v524, %v524
  %v573 = vmul.f32 %v529, %v529
  %v574 = vmul.f32 %v534, %v534
  %v575 = vmul.f32 %v539, %v539
  %v576 = vmul.f32 %v544, %v544
  %v577 = vmul.f32 %v549, %v549
  %v578 = vmul.f32 %v554, %v554
  %v579 = vadd.f32 %v571, %v572
  %v580 = vadd.f32 %v579, %v573
  %v581 = vadd.f32 %v580, %v574
  %v582 = vadd.f32 %v581, %v575
  %v583 = vadd.f32 %v582, %v576
  %v584 = vadd.f32 %v583, %v577
  %v585 = vadd.f32 %v584, %v578
  %v586 = vrot.slane %v585, 4
  %v587 = vadd.f32 %v585, %v586
  %v588 = vrot.slane %v587, 2
  %v589 = vadd.f32 %v587, %v588
  %v590 = vrot.slane %v589, 1
  %v591 = vadd.f32 %v589, %v590
  %v592 = vmul.f32 %v591, %v259
  %v593 = vmul.f32 %v570, %v570
  %v594 = vsub.f32 %v592, %v593
  %v595 = vmax.f32 %v594, 0.0
  %v596 = vsub.f32 %v519, %v570
  %v597 = vsub.f32 %v524, %v570
  %v598 = vsub.f32 %v529, %v570
  %v599 = vsub.f32 %v534, %v570
  %v600 = vsub.f32 %v539, %v570
  %v601 = vsub.f32 %v544, %v570
  %v602 = vsub.f32 %v549, %v570
  %v603 = vsub.f32 %v554, %v570
  %v604 = vadd.f32 %v595, 1e-05
  %v605 = vrsqrt.pop %v604
  %v606 = vmul.f32 %v596, %v605
  %v607 = vmul.f32 %v597, %v605
  %v608 = vmul.f32 %v598, %v605
  %v609 = vmul.f32 %v599, %v605
  %v610 = vmul.f32 %v600, %v605
  %v611 = vmul.f32 %v601, %v605
  %v612 = vmul.f32 %v602, %v605
  %v613 = vmul.f32 %v603, %v605
  %v614 = vld [vmem:[%s6] sm:$0x1]
  %v616 = vlaneseq
  %v617 = vshrl.u32 %v616, 7
  %v618 = vsub.s32 0, %v617
  %v619 = vrot.slane %v614, %v618
  %v621 = vmul.f32 %v619, %v606
  %v622 = vmul.f32 %v619, %v607
  %v623 = vmul.f32 %v619, %v608
  %v624 = vmul.f32 %v619, %v609
  %v625 = vmul.f32 %v619, %v610
  %v626 = vmul.f32 %v619, %v611
  %v627 = vmul.f32 %v619, %v612
  %v628 = vmul.f32 %v619, %v613
  %v629 = vld [vmem:[%s7] sm:$0x1]
  %v631 = vlaneseq
  %v632 = vshrl.u32 %v631, 7
  %v633 = vsub.s32 0, %v632
  %v634 = vrot.slane %v629, %v633
  %v636 = vadd.f32 %v621, %v634
  %v637 = vadd.f32 %v622, %v634
  %v638 = vadd.f32 %v623, %v634
  %v639 = vadd.f32 %v624, %v634
  %v640 = vadd.f32 %v625, %v634
  %v641 = vadd.f32 %v626, %v634
  %v642 = vadd.f32 %v627, %v634
  %v643 = vadd.f32 %v628, %v634
  %v644 = vmax.f32 %v636, 0.0
  %v645 = vmax.f32 %v637, 0.0
  %v646 = vmax.f32 %v638, 0.0
  %v647 = vmax.f32 %v639, 0.0
  %v648 = vmax.f32 %v640, 0.0
  %v649 = vmax.f32 %v641, 0.0
  %v650 = vmax.f32 %v642, 0.0
  %v651 = vmax.f32 %v643, 0.0
  %v652 = vld [vmem:[%s8] sm:$0xff]
  %v653 = vld [vmem:[%s8 + $0x8] sm:$0xff]
  %v654 = vld [vmem:[%s8 + $0x10] sm:$0xff]
  %v655 = vld [vmem:[%s8 + $0x18] sm:$0xff]
  %v656 = vld [vmem:[%s8 + $0x20] sm:$0xff]
  %v657 = vld [vmem:[%s8 + $0x28] sm:$0xff]
  %v658 = vld [vmem:[%s8 + $0x30] sm:$0xff]
  %v659 = vld [vmem:[%s8 + $0x38] sm:$0xff]
  %v660 = vld [vmem:[%s8 + $0x40] sm:$0xff]
  %v661 = vld [vmem:[%s8 + $0x48] sm:$0xff]
  %v662 = vld [vmem:[%s8 + $0x50] sm:$0xff]
  %v663 = vld [vmem:[%s8 + $0x58] sm:$0xff]
  %v664 = vld [vmem:[%s8 + $0x60] sm:$0xff]
  %v665 = vld [vmem:[%s8 + $0x68] sm:$0xff]
  %v666 = vld [vmem:[%s8 + $0x70] sm:$0xff]
  %v667 = vld [vmem:[%s8 + $0x78] sm:$0xff]
  %668 = vmatprep.subr.mxu0 0.0
  %669 = vmatpush1.msra.mxu0 %v652
  %670 = vmatprep.subr.mxu0 0.0
  %671 = vmatpush1.msra.mxu0 %v653
  %672 = vmatprep.subr.mxu0 0.0
  %673 = vmatpush1.msra.mxu0 %v654
  %674 = vmatprep.subr.mxu0 0.0
  %675 = vmatpush1.msra.mxu0 %v655
  %676 = vmatprep.subr.mxu0 0.0
  %677 = vmatpush1.msra.mxu0 %v656
  %678 = vmatprep.subr.mxu0 0.0
  %679 = vmatpush1.msra.mxu0 %v657
  %680 = vmatprep.subr.mxu0 0.0
  %681 = vmatpush1.msra.mxu0 %v658
  %682 = vmatprep.subr.mxu0 0.0
  %683 = vmatpush1.msra.mxu0 %v659
  %684 = vmatprep.subr.mxu0 0.0
  %685 = vmatpush1.msra.mxu0 %v660
  %686 = vmatprep.subr.mxu0 0.0
  %687 = vmatpush1.msra.mxu0 %v661
  %688 = vmatprep.subr.mxu0 0.0
  %689 = vmatpush1.msra.mxu0 %v662
  %690 = vmatprep.subr.mxu0 0.0
  %691 = vmatpush1.msra.mxu0 %v663
  %692 = vmatprep.subr.mxu0 0.0
  %693 = vmatpush1.msra.mxu0 %v664
  %694 = vmatprep.subr.mxu0 0.0
  %695 = vmatpush1.msra.mxu0 %v665
  %696 = vmatprep.subr.mxu0 0.0
  %697 = vmatpush1.msra.mxu0 %v666
  %698 = vmatprep.subr.mxu0 0.0
  %699 = vmatpush1.msra.mxu0 %v667
  %700 = vmatprep.subr.mxu0 0.0
  %701 = vmatpush1.msra.mxu0 0.0
  %702 = vmatprep.subr.mxu0 0.0
  %703 = vmatpush1.msra.mxu0 0.0
  %704 = vmatprep.subr.mxu0 0.0
  %705 = vmatpush1.msra.mxu0 0.0
  %706 = vmatprep.subr.mxu0 0.0
  %707 = vmatpush1.msra.mxu0 0.0
  %708 = vmatprep.subr.mxu0 0.0
  %709 = vmatpush1.msra.mxu0 0.0
  %710 = vmatprep.subr.mxu0 0.0
  %711 = vmatpush1.msra.mxu0 0.0
  %712 = vmatprep.subr.mxu0 0.0
  %713 = vmatpush1.msra.mxu0 0.0
  %714 = vmatprep.subr.mxu0 0.0
  %715 = vmatpush1.msra.mxu0 0.0
  %716 = vmatprep.subr.mxu0 0.0
  %717 = vmatpush1.msra.mxu0 0.0
  %718 = vmatprep.subr.mxu0 0.0
  %719 = vmatpush1.msra.mxu0 0.0
  %720 = vmatprep.subr.mxu0 0.0
  %721 = vmatpush1.msra.mxu0 0.0
  %722 = vmatprep.subr.mxu0 0.0
  %723 = vmatpush1.msra.mxu0 0.0
  %724 = vmatprep.subr.mxu0 0.0
  %725 = vmatpush1.msra.mxu0 0.0
  %726 = vmatprep.subr.mxu0 0.0
  %727 = vmatpush1.msra.mxu0 0.0
  %728 = vmatprep.subr.mxu0 0.0
  %729 = vmatpush1.msra.mxu0 0.0
  %730 = vmatprep.subr.mxu0 0.0
  %731 = vmatpush1.msra.mxu0 0.0
  %732 = vmatprep.mubr.f32.mxu0 0.0
  %733 = vmatmul.mubr.f32.gmra.mrb[0].mxu0 %v644
  %v734 = vpop.f32.mrb[0].mxu0
  %v735 = vadd.f32 0.0, %v734
  %v736 = vpop.f32.mrb[0].mxu0
  %737 = vmatprep.mubr.f32.mxu0 0.0
  %738 = vmatmul.mubr.f32.gmra.mrb[0].mxu0 %v645
  %v739 = vpop.f32.mrb[0].mxu0
  %v740 = vadd.f32 0.0, %v739
  %v741 = vpop.f32.mrb[0].mxu0
  %742 = vmatprep.mubr.f32.mxu0 0.0
  %743 = vmatmul.mubr.f32.gmra.mrb[0].mxu0 %v646
  %v744 = vpop.f32.mrb[0].mxu0
  %v745 = vadd.f32 0.0, %v744
  %v746 = vpop.f32.mrb[0].mxu0
  %747 = vmatprep.mubr.f32.mxu0 0.0
  %748 = vmatmul.mubr.f32.gmra.mrb[0].mxu0 %v647
  %v749 = vpop.f32.mrb[0].mxu0
  %v750 = vadd.f32 0.0, %v749
  %v751 = vpop.f32.mrb[0].mxu0
  %752 = vmatprep.mubr.f32.mxu0 0.0
  %753 = vmatmul.mubr.f32.gmra.mrb[0].mxu0 %v648
  %v754 = vpop.f32.mrb[0].mxu0
  %v755 = vadd.f32 0.0, %v754
  %v756 = vpop.f32.mrb[0].mxu0
  %757 = vmatprep.mubr.f32.mxu0 0.0
  %758 = vmatmul.mubr.f32.gmra.mrb[0].mxu0 %v649
  %v759 = vpop.f32.mrb[0].mxu0
  %v760 = vadd.f32 0.0, %v759
  %v761 = vpop.f32.mrb[0].mxu0
  %762 = vmatprep.mubr.f32.mxu0 0.0
  %763 = vmatmul.mubr.f32.gmra.mrb[0].mxu0 %v650
  %v764 = vpop.f32.mrb[0].mxu0
  %v765 = vadd.f32 0.0, %v764
  %v766 = vpop.f32.mrb[0].mxu0
  %767 = vmatprep.mubr.f32.mxu0 0.0
  %768 = vmatmul.mubr.f32.gmra.mrb[0].mxu0 %v651
  %v769 = vpop.f32.mrb[0].mxu0
  %v770 = vadd.f32 0.0, %v769
  %v771 = vpop.f32.mrb[0].mxu0
  %772 = vdwg.mxu0
  %vm773 = vcmask 261120
  %v774 = vsel %vm773, %v735, 0.0
  %v775 = vsel %vm773, %v740, 0.0
  %v776 = vadd.f32 %v774, %v775
  %v777 = vsel %vm773, %v745, 0.0
  %v778 = vadd.f32 %v776, %v777
  %v779 = vsel %vm773, %v750, 0.0
  %v780 = vadd.f32 %v778, %v779
  %v781 = vsel %vm773, %v755, 0.0
  %v782 = vadd.f32 %v780, %v781
  %v783 = vsel %vm773, %v760, 0.0
  %v784 = vadd.f32 %v782, %v783
  %v785 = vsel %vm773, %v765, 0.0
  %v786 = vadd.f32 %v784, %v785
  %v787 = vsel %vm773, %v770, 0.0
  %v788 = vadd.f32 %v786, %v787
  %v789 = vrot.slane %v788, 4
  %v790 = vadd.f32 %v788, %v789
  %v791 = vrot.slane %v790, 2
  %v792 = vadd.f32 %v790, %v791
  %v793 = vrot.slane %v792, 1
  %v794 = vadd.f32 %v792, %v793
  %v795 = vmul.f32 %v794, %v259
  %v796 = vmul.f32 %v735, %v735
  %v797 = vmul.f32 %v740, %v740
  %v798 = vmul.f32 %v745, %v745
  %v799 = vmul.f32 %v750, %v750
  %v800 = vmul.f32 %v755, %v755
  %v801 = vmul.f32 %v760, %v760
  %v802 = vmul.f32 %v765, %v765
  %v803 = vmul.f32 %v770, %v770
  %v804 = vsel %vm773, %v796, 0.0
  %v805 = vsel %vm773, %v797, 0.0
  %v806 = vadd.f32 %v804, %v805
  %v807 = vsel %vm773, %v798, 0.0
  %v808 = vadd.f32 %v806, %v807
  %v809 = vsel %vm773, %v799, 0.0
  %v810 = vadd.f32 %v808, %v809
  %v811 = vsel %vm773, %v800, 0.0
  %v812 = vadd.f32 %v810, %v811
  %v813 = vsel %vm773, %v801, 0.0
  %v814 = vadd.f32 %v812, %v813
  %v815 = vsel %vm773, %v802, 0.0
  %v816 = vadd.f32 %v814, %v815
  %v817 = vsel %vm773, %v803, 0.0
  %v818 = vadd.f32 %v816, %v817
  %v819 = vrot.slane %v818, 4
  %v820 = vadd.f32 %v818, %v819
  %v821 = vrot.slane %v820, 2
  %v822 = vadd.f32 %v820, %v821
  %v823 = vrot.slane %v822, 1
  %v824 = vadd.f32 %v822, %v823
  %v825 = vmul.f32 %v824, %v259
  %v826 = vmul.f32 %v795, %v795
  %v827 = vsub.f32 %v825, %v826
  %v828 = vmax.f32 %v827, 0.0
  %v829 = vsub.f32 %v735, %v795
  %v830 = vsub.f32 %v740, %v795
  %v831 = vsub.f32 %v745, %v795
  %v832 = vsub.f32 %v750, %v795
  %v833 = vsub.f32 %v755, %v795
  %v834 = vsub.f32 %v760, %v795
  %v835 = vsub.f32 %v765, %v795
  %v836 = vsub.f32 %v770, %v795
  %v837 = vadd.f32 %v828, 1e-05
  %v838 = vrsqrt.pop %v837
  %v839 = vmul.f32 %v829, %v838
  %v840 = vmul.f32 %v830, %v838
  %v841 = vmul.f32 %v831, %v838
  %v842 = vmul.f32 %v832, %v838
  %v843 = vmul.f32 %v833, %v838
  %v844 = vmul.f32 %v834, %v838
  %v845 = vmul.f32 %v835, %v838
  %v846 = vmul.f32 %v836, %v838
  %v847 = vld [vmem:[%s9] sm:$0x1]
  %v849 = vlaneseq
  %v850 = vshrl.u32 %v849, 7
  %v851 = vsub.s32 0, %v850
  %v852 = vrot.slane %v847, %v851
  %v854 = vmul.f32 %v852, %v839
  %v855 = vmul.f32 %v852, %v840
  %v856 = vmul.f32 %v852, %v841
  %v857 = vmul.f32 %v852, %v842
  %v858 = vmul.f32 %v852, %v843
  %v859 = vmul.f32 %v852, %v844
  %v860 = vmul.f32 %v852, %v845
  %v861 = vmul.f32 %v852, %v846
  %v862 = vld [vmem:[%s10] sm:$0x1]
  %v864 = vlaneseq
  %v865 = vshrl.u32 %v864, 7
  %v866 = vsub.s32 0, %v865
  %v867 = vrot.slane %v862, %v866
  %v869 = vadd.f32 %v854, %v867
  %v870 = vadd.f32 %v855, %v867
  %v871 = vadd.f32 %v856, %v867
  %v872 = vadd.f32 %v857, %v867
  %v873 = vadd.f32 %v858, %v867
  %v874 = vadd.f32 %v859, %v867
  %v875 = vadd.f32 %v860, %v867
  %v876 = vadd.f32 %v861, %v867
  %v877 = vmax.f32 %v869, 0.0
  %v878 = vmax.f32 %v870, 0.0
  %v879 = vmax.f32 %v871, 0.0
  %v880 = vmax.f32 %v872, 0.0
  %v881 = vmax.f32 %v873, 0.0
  %v882 = vmax.f32 %v874, 0.0
  %v883 = vmax.f32 %v875, 0.0
  %v884 = vmax.f32 %v876, 0.0
  %v885 = vld [vmem:[%s11] sm:$0xff]
  %v886 = vld [vmem:[%s11 + $0x8] sm:$0xff]
  %v887 = vld [vmem:[%s12] sm:$0x1]
  %v889 = vlaneseq
  %v890 = vshrl.u32 %v889, 7
  %v891 = vsub.s32 0, %v890
  %v892 = vrot.slane %v887, %v891
  %v895 = vsel %vm95, %v877, 0
  %v898 = vsel %vm95, %v878, 0
  %v901 = vsel %vm95, %v879, 0
  %v904 = vsel %vm95, %v880, 0
  %v907 = vsel %vm95, %v881, 0
  %v910 = vsel %vm95, %v882, 0
  %v913 = vsel %vm95, %v883, 0
  %v916 = vsel %vm95, %v884, 0
  %918 = vmatprep.subr.mxu0 0.0
  %919 = vmatpush1.msra.mxu0 %v885
  %920 = vmatprep.subr.mxu0 0.0
  %921 = vmatpush1.msra.mxu0 %v886
  %922 = vmatprep.subr.mxu0 0.0
  %923 = vmatpush1.msra.mxu0 0.0
  %924 = vmatprep.subr.mxu0 0.0
  %925 = vmatpush1.msra.mxu0 0.0
  %926 = vmatprep.subr.mxu0 0.0
  %927 = vmatpush1.msra.mxu0 0.0
  %928 = vmatprep.subr.mxu0 0.0
  %929 = vmatpush1.msra.mxu0 0.0
  %930 = vmatprep.subr.mxu0 0.0
  %931 = vmatpush1.msra.mxu0 0.0
  %932 = vmatprep.subr.mxu0 0.0
  %933 = vmatpush1.msra.mxu0 0.0
  %934 = vmatprep.subr.mxu0 0.0
  %935 = vmatpush1.msra.mxu0 0.0
  %936 = vmatprep.subr.mxu0 0.0
  %937 = vmatpush1.msra.mxu0 0.0
  %938 = vmatprep.subr.mxu0 0.0
  %939 = vmatpush1.msra.mxu0 0.0
  %940 = vmatprep.subr.mxu0 0.0
  %941 = vmatpush1.msra.mxu0 0.0
  %942 = vmatprep.subr.mxu0 0.0
  %943 = vmatpush1.msra.mxu0 0.0
  %944 = vmatprep.subr.mxu0 0.0
  %945 = vmatpush1.msra.mxu0 0.0
  %946 = vmatprep.subr.mxu0 0.0
  %947 = vmatpush1.msra.mxu0 0.0
  %948 = vmatprep.subr.mxu0 0.0
  %949 = vmatpush1.msra.mxu0 0.0
  %950 = vmatprep.subr.mxu0 0.0
  %951 = vmatpush1.msra.mxu0 0.0
  %952 = vmatprep.subr.mxu0 0.0
  %953 = vmatpush1.msra.mxu0 0.0
  %954 = vmatprep.subr.mxu0 0.0
  %955 = vmatpush1.msra.mxu0 0.0
  %956 = vmatprep.subr.mxu0 0.0
  %957 = vmatpush1.msra.mxu0 0.0
  %958 = vmatprep.subr.mxu0 0.0
  %959 = vmatpush1.msra.mxu0 0.0
  %960 = vmatprep.subr.mxu0 0.0
  %961 = vmatpush1.msra.mxu0 0.0
  %962 = vmatprep.subr.mxu0 0.0
  %963 = vmatpush1.msra.mxu0 0.0
  %964 = vmatprep.subr.mxu0 0.0
  %965 = vmatpush1.msra.mxu0 0.0
  %966 = vmatprep.subr.mxu0 0.0
  %967 = vmatpush1.msra.mxu0 0.0
  %968 = vmatprep.subr.mxu0 0.0
  %969 = vmatpush1.msra.mxu0 0.0
  %970 = vmatprep.subr.mxu0 0.0
  %971 = vmatpush1.msra.mxu0 0.0
  %972 = vmatprep.subr.mxu0 0.0
  %973 = vmatpush1.msra.mxu0 0.0
  %974 = vmatprep.subr.mxu0 0.0
  %975 = vmatpush1.msra.mxu0 0.0
  %976 = vmatprep.subr.mxu0 0.0
  %977 = vmatpush1.msra.mxu0 0.0
  %978 = vmatprep.subr.mxu0 0.0
  %979 = vmatpush1.msra.mxu0 0.0
  %980 = vmatprep.subr.mxu0 0.0
  %981 = vmatpush1.msra.mxu0 0.0
  %982 = vmatprep.mubr.f32.mxu0 0.0
  %983 = vmatmul.mubr.f32.gmra.mrb[0].mxu0 %v895
  %v984 = vpop.f32.mrb[0].mxu0
  %v985 = vadd.f32 %v892, %v984
  %v986 = vpop.f32.mrb[0].mxu0
  %987 = vmatprep.mubr.f32.mxu0 0.0
  %988 = vmatmul.mubr.f32.gmra.mrb[0].mxu0 %v898
  %v989 = vpop.f32.mrb[0].mxu0
  %v990 = vadd.f32 %v892, %v989
  %v991 = vpop.f32.mrb[0].mxu0
  %992 = vmatprep.mubr.f32.mxu0 0.0
  %993 = vmatmul.mubr.f32.gmra.mrb[0].mxu0 %v901
  %v994 = vpop.f32.mrb[0].mxu0
  %v995 = vadd.f32 %v892, %v994
  %v996 = vpop.f32.mrb[0].mxu0
  %997 = vmatprep.mubr.f32.mxu0 0.0
  %998 = vmatmul.mubr.f32.gmra.mrb[0].mxu0 %v904
  %v999 = vpop.f32.mrb[0].mxu0
  %v1000 = vadd.f32 %v892, %v999
  %v1001 = vpop.f32.mrb[0].mxu0
  %1002 = vmatprep.mubr.f32.mxu0 0.0
  %1003 = vmatmul.mubr.f32.gmra.mrb[0].mxu0 %v907
  %v1004 = vpop.f32.mrb[0].mxu0
  %v1005 = vadd.f32 %v892, %v1004
  %v1006 = vpop.f32.mrb[0].mxu0
  %1007 = vmatprep.mubr.f32.mxu0 0.0
  %1008 = vmatmul.mubr.f32.gmra.mrb[0].mxu0 %v910
  %v1009 = vpop.f32.mrb[0].mxu0
  %v1010 = vadd.f32 %v892, %v1009
  %v1011 = vpop.f32.mrb[0].mxu0
  %1012 = vmatprep.mubr.f32.mxu0 0.0
  %1013 = vmatmul.mubr.f32.gmra.mrb[0].mxu0 %v913
  %v1014 = vpop.f32.mrb[0].mxu0
  %v1015 = vadd.f32 %v892, %v1014
  %v1016 = vpop.f32.mrb[0].mxu0
  %1017 = vmatprep.mubr.f32.mxu0 0.0
  %1018 = vmatmul.mubr.f32.gmra.mrb[0].mxu0 %v916
  %v1019 = vpop.f32.mrb[0].mxu0
  %v1020 = vadd.f32 %v892, %v1019
  %v1021 = vpop.f32.mrb[0].mxu0
  %1022 = vdwg.mxu0
  %v1023 = vld [vmem:[%s13] sm:$0xff]
  %v1024 = vld [vmem:[%s13 + $0x8] sm:$0xff]
  %1025 = vrot.lane.b32.xlu0 %v877, 112
  %v1026 = vpop.permute.xlu0 %1025
  %1027 = vrot.lane.b32.xlu0 %v878, 112
  %v1028 = vpop.permute.xlu0 %1027
  %1029 = vrot.lane.b32.xlu0 %v879, 112
  %v1030 = vpop.permute.xlu0 %1029
  %1031 = vrot.lane.b32.xlu0 %v880, 112
  %v1032 = vpop.permute.xlu0 %1031
  %1033 = vrot.lane.b32.xlu0 %v881, 112
  %v1034 = vpop.permute.xlu0 %1033
  %1035 = vrot.lane.b32.xlu0 %v882, 112
  %v1036 = vpop.permute.xlu0 %1035
  %1037 = vrot.lane.b32.xlu0 %v883, 112
  %v1038 = vpop.permute.xlu0 %1037
  %1039 = vrot.lane.b32.xlu0 %v884, 112
  %v1040 = vpop.permute.xlu0 %1039
  %v1041 = vsel %vm95, %v1026, 0
  %v1043 = vsel %vm95, %v1028, 0
  %v1045 = vsel %vm95, %v1030, 0
  %v1047 = vsel %vm95, %v1032, 0
  %v1049 = vsel %vm95, %v1034, 0
  %v1051 = vsel %vm95, %v1036, 0
  %v1053 = vsel %vm95, %v1038, 0
  %v1055 = vsel %vm95, %v1040, 0
  %1057 = vmatprep.subr.mxu0 0.0
  %1058 = vmatpush1.msra.mxu0 %v1023
  %1059 = vmatprep.subr.mxu0 0.0
  %1060 = vmatpush1.msra.mxu0 %v1024
  %1061 = vmatprep.subr.mxu0 0.0
  %1062 = vmatpush1.msra.mxu0 0.0
  %1063 = vmatprep.subr.mxu0 0.0
  %1064 = vmatpush1.msra.mxu0 0.0
  %1065 = vmatprep.subr.mxu0 0.0
  %1066 = vmatpush1.msra.mxu0 0.0
  %1067 = vmatprep.subr.mxu0 0.0
  %1068 = vmatpush1.msra.mxu0 0.0
  %1069 = vmatprep.subr.mxu0 0.0
  %1070 = vmatpush1.msra.mxu0 0.0
  %1071 = vmatprep.subr.mxu0 0.0
  %1072 = vmatpush1.msra.mxu0 0.0
  %1073 = vmatprep.subr.mxu0 0.0
  %1074 = vmatpush1.msra.mxu0 0.0
  %1075 = vmatprep.subr.mxu0 0.0
  %1076 = vmatpush1.msra.mxu0 0.0
  %1077 = vmatprep.subr.mxu0 0.0
  %1078 = vmatpush1.msra.mxu0 0.0
  %1079 = vmatprep.subr.mxu0 0.0
  %1080 = vmatpush1.msra.mxu0 0.0
  %1081 = vmatprep.subr.mxu0 0.0
  %1082 = vmatpush1.msra.mxu0 0.0
  %1083 = vmatprep.subr.mxu0 0.0
  %1084 = vmatpush1.msra.mxu0 0.0
  %1085 = vmatprep.subr.mxu0 0.0
  %1086 = vmatpush1.msra.mxu0 0.0
  %1087 = vmatprep.subr.mxu0 0.0
  %1088 = vmatpush1.msra.mxu0 0.0
  %1089 = vmatprep.subr.mxu0 0.0
  %1090 = vmatpush1.msra.mxu0 0.0
  %1091 = vmatprep.subr.mxu0 0.0
  %1092 = vmatpush1.msra.mxu0 0.0
  %1093 = vmatprep.subr.mxu0 0.0
  %1094 = vmatpush1.msra.mxu0 0.0
  %1095 = vmatprep.subr.mxu0 0.0
  %1096 = vmatpush1.msra.mxu0 0.0
  %1097 = vmatprep.subr.mxu0 0.0
  %1098 = vmatpush1.msra.mxu0 0.0
  %1099 = vmatprep.subr.mxu0 0.0
  %1100 = vmatpush1.msra.mxu0 0.0
  %1101 = vmatprep.subr.mxu0 0.0
  %1102 = vmatpush1.msra.mxu0 0.0
  %1103 = vmatprep.subr.mxu0 0.0
  %1104 = vmatpush1.msra.mxu0 0.0
  %1105 = vmatprep.subr.mxu0 0.0
  %1106 = vmatpush1.msra.mxu0 0.0
  %1107 = vmatprep.subr.mxu0 0.0
  %1108 = vmatpush1.msra.mxu0 0.0
  %1109 = vmatprep.subr.mxu0 0.0
  %1110 = vmatpush1.msra.mxu0 0.0
  %1111 = vmatprep.subr.mxu0 0.0
  %1112 = vmatpush1.msra.mxu0 0.0
  %1113 = vmatprep.subr.mxu0 0.0
  %1114 = vmatpush1.msra.mxu0 0.0
  %1115 = vmatprep.subr.mxu0 0.0
  %1116 = vmatpush1.msra.mxu0 0.0
  %1117 = vmatprep.subr.mxu0 0.0
  %1118 = vmatpush1.msra.mxu0 0.0
  %1119 = vmatprep.subr.mxu0 0.0
  %1120 = vmatpush1.msra.mxu0 0.0
  %1121 = vmatprep.mubr.f32.mxu0 0.0
  %1122 = vmatmul.mubr.f32.gmra.mrb[0].mxu0 %v1041
  %v1123 = vpop.f32.mrb[0].mxu0
  %v1124 = vadd.f32 0.0, %v1123
  %v1125 = vpop.f32.mrb[0].mxu0
  %1126 = vmatprep.mubr.f32.mxu0 0.0
  %1127 = vmatmul.mubr.f32.gmra.mrb[0].mxu0 %v1043
  %v1128 = vpop.f32.mrb[0].mxu0
  %v1129 = vadd.f32 0.0, %v1128
  %v1130 = vpop.f32.mrb[0].mxu0
  %1131 = vmatprep.mubr.f32.mxu0 0.0
  %1132 = vmatmul.mubr.f32.gmra.mrb[0].mxu0 %v1045
  %v1133 = vpop.f32.mrb[0].mxu0
  %v1134 = vadd.f32 0.0, %v1133
  %v1135 = vpop.f32.mrb[0].mxu0
  %1136 = vmatprep.mubr.f32.mxu0 0.0
  %1137 = vmatmul.mubr.f32.gmra.mrb[0].mxu0 %v1047
  %v1138 = vpop.f32.mrb[0].mxu0
  %v1139 = vadd.f32 0.0, %v1138
  %v1140 = vpop.f32.mrb[0].mxu0
  %1141 = vmatprep.mubr.f32.mxu0 0.0
  %1142 = vmatmul.mubr.f32.gmra.mrb[0].mxu0 %v1049
  %v1143 = vpop.f32.mrb[0].mxu0
  %v1144 = vadd.f32 0.0, %v1143
  %v1145 = vpop.f32.mrb[0].mxu0
  %1146 = vmatprep.mubr.f32.mxu0 0.0
  %1147 = vmatmul.mubr.f32.gmra.mrb[0].mxu0 %v1051
  %v1148 = vpop.f32.mrb[0].mxu0
  %v1149 = vadd.f32 0.0, %v1148
  %v1150 = vpop.f32.mrb[0].mxu0
  %1151 = vmatprep.mubr.f32.mxu0 0.0
  %1152 = vmatmul.mubr.f32.gmra.mrb[0].mxu0 %v1053
  %v1153 = vpop.f32.mrb[0].mxu0
  %v1154 = vadd.f32 0.0, %v1153
  %v1155 = vpop.f32.mrb[0].mxu0
  %1156 = vmatprep.mubr.f32.mxu0 0.0
  %1157 = vmatmul.mubr.f32.gmra.mrb[0].mxu0 %v1055
  %v1158 = vpop.f32.mrb[0].mxu0
  %v1159 = vadd.f32 0.0, %v1158
  %v1160 = vpop.f32.mrb[0].mxu0
  %1161 = vdwg.mxu0
  %v1162 = vsel %vm95, %v1124, 0.0
  %v1163 = vsel %vm95, %v1129, 0.0
  %v1164 = vadd.f32 %v1162, %v1163
  %v1165 = vsel %vm95, %v1134, 0.0
  %v1166 = vadd.f32 %v1164, %v1165
  %v1167 = vsel %vm95, %v1139, 0.0
  %v1168 = vadd.f32 %v1166, %v1167
  %v1169 = vsel %vm95, %v1144, 0.0
  %v1170 = vadd.f32 %v1168, %v1169
  %v1171 = vsel %vm95, %v1149, 0.0
  %v1172 = vadd.f32 %v1170, %v1171
  %v1173 = vsel %vm95, %v1154, 0.0
  %v1174 = vadd.f32 %v1172, %v1173
  %v1175 = vsel %vm95, %v1159, 0.0
  %v1176 = vadd.f32 %v1174, %v1175
  %v1177 = vrot.slane %v1176, 4
  %v1178 = vadd.f32 %v1176, %v1177
  %v1179 = vrot.slane %v1178, 2
  %v1180 = vadd.f32 %v1178, %v1179
  %v1181 = vrot.slane %v1180, 1
  %v1182 = vadd.f32 %v1180, %v1181
  %v1183 = vmul.f32 %v1182, %v259
  %v1184 = vmul.f32 %v1124, %v1124
  %v1185 = vmul.f32 %v1129, %v1129
  %v1186 = vmul.f32 %v1134, %v1134
  %v1187 = vmul.f32 %v1139, %v1139
  %v1188 = vmul.f32 %v1144, %v1144
  %v1189 = vmul.f32 %v1149, %v1149
  %v1190 = vmul.f32 %v1154, %v1154
  %v1191 = vmul.f32 %v1159, %v1159
  %v1192 = vsel %vm95, %v1184, 0.0
  %v1193 = vsel %vm95, %v1185, 0.0
  %v1194 = vadd.f32 %v1192, %v1193
  %v1195 = vsel %vm95, %v1186, 0.0
  %v1196 = vadd.f32 %v1194, %v1195
  %v1197 = vsel %vm95, %v1187, 0.0
  %v1198 = vadd.f32 %v1196, %v1197
  %v1199 = vsel %vm95, %v1188, 0.0
  %v1200 = vadd.f32 %v1198, %v1199
  %v1201 = vsel %vm95, %v1189, 0.0
  %v1202 = vadd.f32 %v1200, %v1201
  %v1203 = vsel %vm95, %v1190, 0.0
  %v1204 = vadd.f32 %v1202, %v1203
  %v1205 = vsel %vm95, %v1191, 0.0
  %v1206 = vadd.f32 %v1204, %v1205
  %v1207 = vrot.slane %v1206, 4
  %v1208 = vadd.f32 %v1206, %v1207
  %v1209 = vrot.slane %v1208, 2
  %v1210 = vadd.f32 %v1208, %v1209
  %v1211 = vrot.slane %v1210, 1
  %v1212 = vadd.f32 %v1210, %v1211
  %v1213 = vmul.f32 %v1212, %v259
  %v1214 = vmul.f32 %v1183, %v1183
  %v1215 = vsub.f32 %v1213, %v1214
  %v1216 = vmax.f32 %v1215, 0.0
  %v1217 = vsub.f32 %v1124, %v1183
  %v1218 = vsub.f32 %v1129, %v1183
  %v1219 = vsub.f32 %v1134, %v1183
  %v1220 = vsub.f32 %v1139, %v1183
  %v1221 = vsub.f32 %v1144, %v1183
  %v1222 = vsub.f32 %v1149, %v1183
  %v1223 = vsub.f32 %v1154, %v1183
  %v1224 = vsub.f32 %v1159, %v1183
  %v1225 = vadd.f32 %v1216, 1e-05
  %v1226 = vrsqrt.pop %v1225
  %v1227 = vmul.f32 %v1217, %v1226
  %v1228 = vmul.f32 %v1218, %v1226
  %v1229 = vmul.f32 %v1219, %v1226
  %v1230 = vmul.f32 %v1220, %v1226
  %v1231 = vmul.f32 %v1221, %v1226
  %v1232 = vmul.f32 %v1222, %v1226
  %v1233 = vmul.f32 %v1223, %v1226
  %v1234 = vmul.f32 %v1224, %v1226
  %v1235 = vld [vmem:[%s14] sm:$0x1]
  %v1237 = vlaneseq
  %v1238 = vshrl.u32 %v1237, 7
  %v1239 = vsub.s32 0, %v1238
  %v1240 = vrot.slane %v1235, %v1239
  %v1242 = vmul.f32 %v1240, %v1227
  %v1243 = vmul.f32 %v1240, %v1228
  %v1244 = vmul.f32 %v1240, %v1229
  %v1245 = vmul.f32 %v1240, %v1230
  %v1246 = vmul.f32 %v1240, %v1231
  %v1247 = vmul.f32 %v1240, %v1232
  %v1248 = vmul.f32 %v1240, %v1233
  %v1249 = vmul.f32 %v1240, %v1234
  %v1250 = vld [vmem:[%s15] sm:$0x1]
  %v1252 = vlaneseq
  %v1253 = vshrl.u32 %v1252, 7
  %v1254 = vsub.s32 0, %v1253
  %v1255 = vrot.slane %v1250, %v1254
  %v1257 = vadd.f32 %v1242, %v1255
  %v1258 = vadd.f32 %v1243, %v1255
  %v1259 = vadd.f32 %v1244, %v1255
  %v1260 = vadd.f32 %v1245, %v1255
  %v1261 = vadd.f32 %v1246, %v1255
  %v1262 = vadd.f32 %v1247, %v1255
  %v1263 = vadd.f32 %v1248, %v1255
  %v1264 = vadd.f32 %v1249, %v1255
  %v1265 = vmax.f32 %v1257, 0.0
  %v1266 = vmax.f32 %v1258, 0.0
  %v1267 = vmax.f32 %v1259, 0.0
  %v1268 = vmax.f32 %v1260, 0.0
  %v1269 = vmax.f32 %v1261, 0.0
  %v1270 = vmax.f32 %v1262, 0.0
  %v1271 = vmax.f32 %v1263, 0.0
  %v1272 = vmax.f32 %v1264, 0.0
  %v1273 = vld [vmem:[%s16] sm:$0xff]
  %v1274 = vld [vmem:[%s16 + $0x8] sm:$0xff]
  %v1275 = vld [vmem:[%s17] sm:$0x1]
  %v1277 = vlaneseq
  %v1278 = vshrl.u32 %v1277, 7
  %v1279 = vsub.s32 0, %v1278
  %v1280 = vrot.slane %v1275, %v1279
  %v1283 = vsel %vm95, %v1265, 0
  %v1286 = vsel %vm95, %v1266, 0
  %v1289 = vsel %vm95, %v1267, 0
  %v1292 = vsel %vm95, %v1268, 0
  %v1295 = vsel %vm95, %v1269, 0
  %v1298 = vsel %vm95, %v1270, 0
  %v1301 = vsel %vm95, %v1271, 0
  %v1304 = vsel %vm95, %v1272, 0
  %1306 = vmatprep.subr.mxu0 0.0
  %1307 = vmatpush1.msra.mxu0 %v1273
  %1308 = vmatprep.subr.mxu0 0.0
  %1309 = vmatpush1.msra.mxu0 %v1274
  %1310 = vmatprep.subr.mxu0 0.0
  %1311 = vmatpush1.msra.mxu0 0.0
  %1312 = vmatprep.subr.mxu0 0.0
  %1313 = vmatpush1.msra.mxu0 0.0
  %1314 = vmatprep.subr.mxu0 0.0
  %1315 = vmatpush1.msra.mxu0 0.0
  %1316 = vmatprep.subr.mxu0 0.0
  %1317 = vmatpush1.msra.mxu0 0.0
  %1318 = vmatprep.subr.mxu0 0.0
  %1319 = vmatpush1.msra.mxu0 0.0
  %1320 = vmatprep.subr.mxu0 0.0
  %1321 = vmatpush1.msra.mxu0 0.0
  %1322 = vmatprep.subr.mxu0 0.0
  %1323 = vmatpush1.msra.mxu0 0.0
  %1324 = vmatprep.subr.mxu0 0.0
  %1325 = vmatpush1.msra.mxu0 0.0
  %1326 = vmatprep.subr.mxu0 0.0
  %1327 = vmatpush1.msra.mxu0 0.0
  %1328 = vmatprep.subr.mxu0 0.0
  %1329 = vmatpush1.msra.mxu0 0.0
  %1330 = vmatprep.subr.mxu0 0.0
  %1331 = vmatpush1.msra.mxu0 0.0
  %1332 = vmatprep.subr.mxu0 0.0
  %1333 = vmatpush1.msra.mxu0 0.0
  %1334 = vmatprep.subr.mxu0 0.0
  %1335 = vmatpush1.msra.mxu0 0.0
  %1336 = vmatprep.subr.mxu0 0.0
  %1337 = vmatpush1.msra.mxu0 0.0
  %1338 = vmatprep.subr.mxu0 0.0
  %1339 = vmatpush1.msra.mxu0 0.0
  %1340 = vmatprep.subr.mxu0 0.0
  %1341 = vmatpush1.msra.mxu0 0.0
  %1342 = vmatprep.subr.mxu0 0.0
  %1343 = vmatpush1.msra.mxu0 0.0
  %1344 = vmatprep.subr.mxu0 0.0
  %1345 = vmatpush1.msra.mxu0 0.0
  %1346 = vmatprep.subr.mxu0 0.0
  %1347 = vmatpush1.msra.mxu0 0.0
  %1348 = vmatprep.subr.mxu0 0.0
  %1349 = vmatpush1.msra.mxu0 0.0
  %1350 = vmatprep.subr.mxu0 0.0
  %1351 = vmatpush1.msra.mxu0 0.0
  %1352 = vmatprep.subr.mxu0 0.0
  %1353 = vmatpush1.msra.mxu0 0.0
  %1354 = vmatprep.subr.mxu0 0.0
  %1355 = vmatpush1.msra.mxu0 0.0
  %1356 = vmatprep.subr.mxu0 0.0
  %1357 = vmatpush1.msra.mxu0 0.0
  %1358 = vmatprep.subr.mxu0 0.0
  %1359 = vmatpush1.msra.mxu0 0.0
  %1360 = vmatprep.subr.mxu0 0.0
  %1361 = vmatpush1.msra.mxu0 0.0
  %1362 = vmatprep.subr.mxu0 0.0
  %1363 = vmatpush1.msra.mxu0 0.0
  %1364 = vmatprep.subr.mxu0 0.0
  %1365 = vmatpush1.msra.mxu0 0.0
  %1366 = vmatprep.subr.mxu0 0.0
  %1367 = vmatpush1.msra.mxu0 0.0
  %1368 = vmatprep.subr.mxu0 0.0
  %1369 = vmatpush1.msra.mxu0 0.0
  %1370 = vmatprep.mubr.f32.mxu0 0.0
  %1371 = vmatmul.mubr.f32.gmra.mrb[0].mxu0 %v1283
  %v1372 = vpop.f32.mrb[0].mxu0
  %v1373 = vadd.f32 %v1280, %v1372
  %v1374 = vpop.f32.mrb[0].mxu0
  %1375 = vmatprep.mubr.f32.mxu0 0.0
  %1376 = vmatmul.mubr.f32.gmra.mrb[0].mxu0 %v1286
  %v1377 = vpop.f32.mrb[0].mxu0
  %v1378 = vadd.f32 %v1280, %v1377
  %v1379 = vpop.f32.mrb[0].mxu0
  %1380 = vmatprep.mubr.f32.mxu0 0.0
  %1381 = vmatmul.mubr.f32.gmra.mrb[0].mxu0 %v1289
  %v1382 = vpop.f32.mrb[0].mxu0
  %v1383 = vadd.f32 %v1280, %v1382
  %v1384 = vpop.f32.mrb[0].mxu0
  %1385 = vmatprep.mubr.f32.mxu0 0.0
  %1386 = vmatmul.mubr.f32.gmra.mrb[0].mxu0 %v1292
  %v1387 = vpop.f32.mrb[0].mxu0
  %v1388 = vadd.f32 %v1280, %v1387
  %v1389 = vpop.f32.mrb[0].mxu0
  %1390 = vmatprep.mubr.f32.mxu0 0.0
  %1391 = vmatmul.mubr.f32.gmra.mrb[0].mxu0 %v1295
  %v1392 = vpop.f32.mrb[0].mxu0
  %v1393 = vadd.f32 %v1280, %v1392
  %v1394 = vpop.f32.mrb[0].mxu0
  %1395 = vmatprep.mubr.f32.mxu0 0.0
  %1396 = vmatmul.mubr.f32.gmra.mrb[0].mxu0 %v1298
  %v1397 = vpop.f32.mrb[0].mxu0
  %v1398 = vadd.f32 %v1280, %v1397
  %v1399 = vpop.f32.mrb[0].mxu0
  %1400 = vmatprep.mubr.f32.mxu0 0.0
  %1401 = vmatmul.mubr.f32.gmra.mrb[0].mxu0 %v1301
  %v1402 = vpop.f32.mrb[0].mxu0
  %v1403 = vadd.f32 %v1280, %v1402
  %v1404 = vpop.f32.mrb[0].mxu0
  %1405 = vmatprep.mubr.f32.mxu0 0.0
  %1406 = vmatmul.mubr.f32.gmra.mrb[0].mxu0 %v1304
  %v1407 = vpop.f32.mrb[0].mxu0
  %v1408 = vadd.f32 %v1280, %v1407
  %v1409 = vpop.f32.mrb[0].mxu0
  %1410 = vdwg.mxu0
  %vm1411 = vcmask 31744
  %v1412 = vsel %vm1411, %v1373, -inf
  %1413 = vmax.xlane.f32.xlu0 %v1412
  %v1414 = vpop.xlane.xlu0 %1413
  %v1415 = vsel %vm1411, %v1378, -inf
  %1416 = vmax.xlane.f32.xlu0 %v1415
  %v1417 = vpop.xlane.xlu0 %1416
  %v1418 = vsel %vm1411, %v1383, -inf
  %1419 = vmax.xlane.f32.xlu0 %v1418
  %v1420 = vpop.xlane.xlu0 %1419
  %v1421 = vsel %vm1411, %v1388, -inf
  %1422 = vmax.xlane.f32.xlu0 %v1421
  %v1423 = vpop.xlane.xlu0 %1422
  %v1424 = vsel %vm1411, %v1393, -inf
  %1425 = vmax.xlane.f32.xlu0 %v1424
  %v1426 = vpop.xlane.xlu0 %1425
  %v1427 = vsel %vm1411, %v1398, -inf
  %1428 = vmax.xlane.f32.xlu0 %v1427
  %v1429 = vpop.xlane.xlu0 %1428
  %v1430 = vsel %vm1411, %v1403, -inf
  %1431 = vmax.xlane.f32.xlu0 %v1430
  %v1432 = vpop.xlane.xlu0 %1431
  %v1433 = vsel %vm1411, %v1408, -inf
  %1434 = vmax.xlane.f32.xlu0 %v1433
  %v1435 = vpop.xlane.xlu0 %1434
  %v1436 = vsub.f32 %v1373, %v1414
  %v1437 = vsub.f32 %v1378, %v1417
  %v1438 = vsub.f32 %v1383, %v1420
  %v1439 = vsub.f32 %v1388, %v1423
  %v1440 = vsub.f32 %v1393, %v1426
  %v1441 = vsub.f32 %v1398, %v1429
  %v1442 = vsub.f32 %v1403, %v1432
  %v1443 = vsub.f32 %v1408, %v1435
  %v1444 = vmul.f32 %v1436, 1.442695
  %v1445 = vpow.pop %v1444
  %v1446 = vmul.f32 %v1437, 1.442695
  %v1447 = vpow.pop %v1446
  %v1448 = vmul.f32 %v1438, 1.442695
  %v1449 = vpow.pop %v1448
  %v1450 = vmul.f32 %v1439, 1.442695
  %v1451 = vpow.pop %v1450
  %v1452 = vmul.f32 %v1440, 1.442695
  %v1453 = vpow.pop %v1452
  %v1454 = vmul.f32 %v1441, 1.442695
  %v1455 = vpow.pop %v1454
  %v1456 = vmul.f32 %v1442, 1.442695
  %v1457 = vpow.pop %v1456
  %v1458 = vmul.f32 %v1443, 1.442695
  %v1459 = vpow.pop %v1458
  %v1460 = vsel %vm1411, %v1445, 0.0
  %1461 = vadd.xlane.f32.xlu0 %v1460
  %v1462 = vpop.xlane.xlu0 %1461
  %v1463 = vsel %vm1411, %v1447, 0.0
  %1464 = vadd.xlane.f32.xlu0 %v1463
  %v1465 = vpop.xlane.xlu0 %1464
  %v1466 = vsel %vm1411, %v1449, 0.0
  %1467 = vadd.xlane.f32.xlu0 %v1466
  %v1468 = vpop.xlane.xlu0 %1467
  %v1469 = vsel %vm1411, %v1451, 0.0
  %1470 = vadd.xlane.f32.xlu0 %v1469
  %v1471 = vpop.xlane.xlu0 %1470
  %v1472 = vsel %vm1411, %v1453, 0.0
  %1473 = vadd.xlane.f32.xlu0 %v1472
  %v1474 = vpop.xlane.xlu0 %1473
  %v1475 = vsel %vm1411, %v1455, 0.0
  %1476 = vadd.xlane.f32.xlu0 %v1475
  %v1477 = vpop.xlane.xlu0 %1476
  %v1478 = vsel %vm1411, %v1457, 0.0
  %1479 = vadd.xlane.f32.xlu0 %v1478
  %v1480 = vpop.xlane.xlu0 %1479
  %v1481 = vsel %vm1411, %v1459, 0.0
  %1482 = vadd.xlane.f32.xlu0 %v1481
  %v1483 = vpop.xlane.xlu0 %1482
  %v1484 = vrcp.pop %v1462
  %v1485 = vrcp.pop %v1465
  %v1486 = vrcp.pop %v1468
  %v1487 = vrcp.pop %v1471
  %v1488 = vrcp.pop %v1474
  %v1489 = vrcp.pop %v1477
  %v1490 = vrcp.pop %v1480
  %v1491 = vrcp.pop %v1483
  %v1492 = vmul.f32 %v1445, %v1484
  %v1493 = vmul.f32 %v1447, %v1485
  %v1494 = vmul.f32 %v1449, %v1486
  %v1495 = vmul.f32 %v1451, %v1487
  %v1496 = vmul.f32 %v1453, %v1488
  %v1497 = vmul.f32 %v1455, %v1489
  %v1498 = vmul.f32 %v1457, %v1490
  %v1499 = vmul.f32 %v1459, %v1491
  %v1500 = vld [vmem:[%s1] sm:$0xff]
  %v1501 = vld [vmem:[%s1 + $0x8] sm:$0xff]
  %v1502 = vld [vmem:[%s1 + $0x10] sm:$0xff]
  %v1503 = vld [vmem:[%s1 + $0x18] sm:$0xff]
  %v1504 = vld [vmem:[%s1 + $0x20] sm:$0xff]
  %v1505 = vld [vmem:[%s1 + $0x28] sm:$0xff]
  %v1506 = vld [vmem:[%s1 + $0x30] sm:$0xff]
  %v1507 = vld [vmem:[%s1 + $0x38] sm:$0xff]
  %v1508 = vmul.f32 %v985, 0.5
  %v1509 = vmul.f32 %v990, 0.5
  %v1510 = vmul.f32 %v995, 0.5
  %v1511 = vmul.f32 %v1000, 0.5
  %v1512 = vmul.f32 %v1005, 0.5
  %v1513 = vmul.f32 %v1010, 0.5
  %v1514 = vmul.f32 %v1015, 0.5
  %v1515 = vmul.f32 %v1020, 0.5
  %v1516 = vmul.f32 %v1508, 1.442695
  %v1517 = vpow.pop %v1516
  %v1518 = vmul.f32 %v1509, 1.442695
  %v1519 = vpow.pop %v1518
  %v1520 = vmul.f32 %v1510, 1.442695
  %v1521 = vpow.pop %v1520
  %v1522 = vmul.f32 %v1511, 1.442695
  %v1523 = vpow.pop %v1522
  %v1524 = vmul.f32 %v1512, 1.442695
  %v1525 = vpow.pop %v1524
  %v1526 = vmul.f32 %v1513, 1.442695
  %v1527 = vpow.pop %v1526
  %v1528 = vmul.f32 %v1514, 1.442695
  %v1529 = vpow.pop %v1528
  %v1530 = vmul.f32 %v1515, 1.442695
  %v1531 = vpow.pop %v1530
  %1540 = vrot.lane.b32.xlu0 %v1517, 124
  %v1541 = vpop.permute.xlu0 %1540
  %1542 = vrot.lane.b32.xlu0 %v1519, 124
  %v1543 = vpop.permute.xlu0 %1542
  %1544 = vrot.lane.b32.xlu0 %v1521, 124
  %v1545 = vpop.permute.xlu0 %1544
  %1546 = vrot.lane.b32.xlu0 %v1523, 124
  %v1547 = vpop.permute.xlu0 %1546
  %1548 = vrot.lane.b32.xlu0 %v1525, 124
  %v1549 = vpop.permute.xlu0 %1548
  %1550 = vrot.lane.b32.xlu0 %v1527, 124
  %v1551 = vpop.permute.xlu0 %1550
  %1552 = vrot.lane.b32.xlu0 %v1529, 124
  %v1553 = vpop.permute.xlu0 %1552
  %1554 = vrot.lane.b32.xlu0 %v1531, 124
  %v1555 = vpop.permute.xlu0 %1554
  %v1564 = vmul.f32 %v1500, %v1541
  %v1565 = vmul.f32 %v1501, %v1543
  %v1566 = vmul.f32 %v1502, %v1545
  %v1567 = vmul.f32 %v1503, %v1547
  %v1568 = vmul.f32 %v1504, %v1549
  %v1569 = vmul.f32 %v1505, %v1551
  %v1570 = vmul.f32 %v1506, %v1553
  %v1571 = vmul.f32 %v1507, %v1555
  %v1572 = vadd.f32 %v985, %v1564
  %v1573 = vadd.f32 %v990, %v1565
  %v1574 = vadd.f32 %v995, %v1566
  %v1575 = vadd.f32 %v1000, %v1567
  %v1576 = vadd.f32 %v1005, %v1568
  %v1577 = vadd.f32 %v1010, %v1569
  %v1578 = vadd.f32 %v1015, %v1570
  %v1579 = vadd.f32 %v1020, %v1571
  %v1580 = vld [vmem:[%s18] sm:$0xf]
  %v1582 = vsel %vm1411, %v1572, 0
  %v1585 = vsel %vm1411, %v1573, 0
  %v1588 = vsel %vm1411, %v1574, 0
  %v1591 = vsel %vm1411, %v1575, 0
  %v1594 = vsel %vm1411, %v1576, 0
  %v1597 = vsel %vm1411, %v1577, 0
  %v1600 = vsel %vm1411, %v1578, 0
  %v1603 = vsel %vm1411, %v1579, 0
  %vm1605 = vcmask 1043456
  %v1607 = vsel %vm1605, %v1580, 0
  %1609 = vmatprep.subr.mxu0 0.0
  %1610 = vmatpush1.msra.mxu0 %v1607
  %1611 = vmatprep.subr.mxu0 0.0
  %1612 = vmatpush1.msra.mxu0 0.0
  %1613 = vmatprep.subr.mxu0 0.0
  %1614 = vmatpush1.msra.mxu0 0.0
  %1615 = vmatprep.subr.mxu0 0.0
  %1616 = vmatpush1.msra.mxu0 0.0
  %1617 = vmatprep.subr.mxu0 0.0
  %1618 = vmatpush1.msra.mxu0 0.0
  %1619 = vmatprep.subr.mxu0 0.0
  %1620 = vmatpush1.msra.mxu0 0.0
  %1621 = vmatprep.subr.mxu0 0.0
  %1622 = vmatpush1.msra.mxu0 0.0
  %1623 = vmatprep.subr.mxu0 0.0
  %1624 = vmatpush1.msra.mxu0 0.0
  %1625 = vmatprep.subr.mxu0 0.0
  %1626 = vmatpush1.msra.mxu0 0.0
  %1627 = vmatprep.subr.mxu0 0.0
  %1628 = vmatpush1.msra.mxu0 0.0
  %1629 = vmatprep.subr.mxu0 0.0
  %1630 = vmatpush1.msra.mxu0 0.0
  %1631 = vmatprep.subr.mxu0 0.0
  %1632 = vmatpush1.msra.mxu0 0.0
  %1633 = vmatprep.subr.mxu0 0.0
  %1634 = vmatpush1.msra.mxu0 0.0
  %1635 = vmatprep.subr.mxu0 0.0
  %1636 = vmatpush1.msra.mxu0 0.0
  %1637 = vmatprep.subr.mxu0 0.0
  %1638 = vmatpush1.msra.mxu0 0.0
  %1639 = vmatprep.subr.mxu0 0.0
  %1640 = vmatpush1.msra.mxu0 0.0
  %1641 = vmatprep.subr.mxu0 0.0
  %1642 = vmatpush1.msra.mxu0 0.0
  %1643 = vmatprep.subr.mxu0 0.0
  %1644 = vmatpush1.msra.mxu0 0.0
  %1645 = vmatprep.subr.mxu0 0.0
  %1646 = vmatpush1.msra.mxu0 0.0
  %1647 = vmatprep.subr.mxu0 0.0
  %1648 = vmatpush1.msra.mxu0 0.0
  %1649 = vmatprep.subr.mxu0 0.0
  %1650 = vmatpush1.msra.mxu0 0.0
  %1651 = vmatprep.subr.mxu0 0.0
  %1652 = vmatpush1.msra.mxu0 0.0
  %1653 = vmatprep.subr.mxu0 0.0
  %1654 = vmatpush1.msra.mxu0 0.0
  %1655 = vmatprep.subr.mxu0 0.0
  %1656 = vmatpush1.msra.mxu0 0.0
  %1657 = vmatprep.subr.mxu0 0.0
  %1658 = vmatpush1.msra.mxu0 0.0
  %1659 = vmatprep.subr.mxu0 0.0
  %1660 = vmatpush1.msra.mxu0 0.0
  %1661 = vmatprep.subr.mxu0 0.0
  %1662 = vmatpush1.msra.mxu0 0.0
  %1663 = vmatprep.subr.mxu0 0.0
  %1664 = vmatpush1.msra.mxu0 0.0
  %1665 = vmatprep.subr.mxu0 0.0
  %1666 = vmatpush1.msra.mxu0 0.0
  %1667 = vmatprep.subr.mxu0 0.0
  %1668 = vmatpush1.msra.mxu0 0.0
  %1669 = vmatprep.subr.mxu0 0.0
  %1670 = vmatpush1.msra.mxu0 0.0
  %1671 = vmatprep.subr.mxu0 0.0
  %1672 = vmatpush1.msra.mxu0 0.0
  %1673 = vmatprep.mubr.f32.mxu0 0.0
  %1674 = vmatmul.mubr.f32.gmra.mrb[0].mxu0 %v1582
  %v1675 = vpop.f32.mrb[0].mxu0
  %v1676 = vadd.f32 0.0, %v1675
  %v1677 = vpop.f32.mrb[0].mxu0
  %1678 = vmatprep.mubr.f32.mxu0 0.0
  %1679 = vmatmul.mubr.f32.gmra.mrb[0].mxu0 %v1585
  %v1680 = vpop.f32.mrb[0].mxu0
  %v1681 = vadd.f32 0.0, %v1680
  %v1682 = vpop.f32.mrb[0].mxu0
  %1683 = vmatprep.mubr.f32.mxu0 0.0
  %1684 = vmatmul.mubr.f32.gmra.mrb[0].mxu0 %v1588
  %v1685 = vpop.f32.mrb[0].mxu0
  %v1686 = vadd.f32 0.0, %v1685
  %v1687 = vpop.f32.mrb[0].mxu0
  %1688 = vmatprep.mubr.f32.mxu0 0.0
  %1689 = vmatmul.mubr.f32.gmra.mrb[0].mxu0 %v1591
  %v1690 = vpop.f32.mrb[0].mxu0
  %v1691 = vadd.f32 0.0, %v1690
  %v1692 = vpop.f32.mrb[0].mxu0
  %1693 = vmatprep.mubr.f32.mxu0 0.0
  %1694 = vmatmul.mubr.f32.gmra.mrb[0].mxu0 %v1594
  %v1695 = vpop.f32.mrb[0].mxu0
  %v1696 = vadd.f32 0.0, %v1695
  %v1697 = vpop.f32.mrb[0].mxu0
  %1698 = vmatprep.mubr.f32.mxu0 0.0
  %1699 = vmatmul.mubr.f32.gmra.mrb[0].mxu0 %v1597
  %v1700 = vpop.f32.mrb[0].mxu0
  %v1701 = vadd.f32 0.0, %v1700
  %v1702 = vpop.f32.mrb[0].mxu0
  %1703 = vmatprep.mubr.f32.mxu0 0.0
  %1704 = vmatmul.mubr.f32.gmra.mrb[0].mxu0 %v1600
  %v1705 = vpop.f32.mrb[0].mxu0
  %v1706 = vadd.f32 0.0, %v1705
  %v1707 = vpop.f32.mrb[0].mxu0
  %1708 = vmatprep.mubr.f32.mxu0 0.0
  %1709 = vmatmul.mubr.f32.gmra.mrb[0].mxu0 %v1603
  %v1710 = vpop.f32.mrb[0].mxu0
  %v1711 = vadd.f32 0.0, %v1710
  %v1712 = vpop.f32.mrb[0].mxu0
  %1713 = vdwg.mxu0
  %v1714 = vsel %vm95, %v1676, 0.0
  %v1715 = vsel %vm95, %v1681, 0.0
  %v1716 = vadd.f32 %v1714, %v1715
  %v1717 = vsel %vm95, %v1686, 0.0
  %v1718 = vadd.f32 %v1716, %v1717
  %v1719 = vsel %vm95, %v1691, 0.0
  %v1720 = vadd.f32 %v1718, %v1719
  %v1721 = vsel %vm95, %v1696, 0.0
  %v1722 = vadd.f32 %v1720, %v1721
  %v1723 = vsel %vm95, %v1701, 0.0
  %v1724 = vadd.f32 %v1722, %v1723
  %v1725 = vsel %vm95, %v1706, 0.0
  %v1726 = vadd.f32 %v1724, %v1725
  %v1727 = vsel %vm95, %v1711, 0.0
  %v1728 = vadd.f32 %v1726, %v1727
  %v1729 = vrot.slane %v1728, 4
  %v1730 = vadd.f32 %v1728, %v1729
  %v1731 = vrot.slane %v1730, 2
  %v1732 = vadd.f32 %v1730, %v1731
  %v1733 = vrot.slane %v1732, 1
  %v1734 = vadd.f32 %v1732, %v1733
  %v1735 = vmul.f32 %v1734, %v259
  %v1736 = vmul.f32 %v1676, %v1676
  %v1737 = vmul.f32 %v1681, %v1681
  %v1738 = vmul.f32 %v1686, %v1686
  %v1739 = vmul.f32 %v1691, %v1691
  %v1740 = vmul.f32 %v1696, %v1696
  %v1741 = vmul.f32 %v1701, %v1701
  %v1742 = vmul.f32 %v1706, %v1706
  %v1743 = vmul.f32 %v1711, %v1711
  %v1744 = vsel %vm95, %v1736, 0.0
  %v1745 = vsel %vm95, %v1737, 0.0
  %v1746 = vadd.f32 %v1744, %v1745
  %v1747 = vsel %vm95, %v1738, 0.0
  %v1748 = vadd.f32 %v1746, %v1747
  %v1749 = vsel %vm95, %v1739, 0.0
  %v1750 = vadd.f32 %v1748, %v1749
  %v1751 = vsel %vm95, %v1740, 0.0
  %v1752 = vadd.f32 %v1750, %v1751
  %v1753 = vsel %vm95, %v1741, 0.0
  %v1754 = vadd.f32 %v1752, %v1753
  %v1755 = vsel %vm95, %v1742, 0.0
  %v1756 = vadd.f32 %v1754, %v1755
  %v1757 = vsel %vm95, %v1743, 0.0
  %v1758 = vadd.f32 %v1756, %v1757
  %v1759 = vrot.slane %v1758, 4
  %v1760 = vadd.f32 %v1758, %v1759
  %v1761 = vrot.slane %v1760, 2
  %v1762 = vadd.f32 %v1760, %v1761
  %v1763 = vrot.slane %v1762, 1
  %v1764 = vadd.f32 %v1762, %v1763
  %v1765 = vmul.f32 %v1764, %v259
  %v1766 = vmul.f32 %v1735, %v1735
  %v1767 = vsub.f32 %v1765, %v1766
  %v1768 = vmax.f32 %v1767, 0.0
  %v1769 = vsub.f32 %v1676, %v1735
  %v1770 = vsub.f32 %v1681, %v1735
  %v1771 = vsub.f32 %v1686, %v1735
  %v1772 = vsub.f32 %v1691, %v1735
  %v1773 = vsub.f32 %v1696, %v1735
  %v1774 = vsub.f32 %v1701, %v1735
  %v1775 = vsub.f32 %v1706, %v1735
  %v1776 = vsub.f32 %v1711, %v1735
  %v1777 = vadd.f32 %v1768, 1e-05
  %v1778 = vrsqrt.pop %v1777
  %v1779 = vmul.f32 %v1769, %v1778
  %v1780 = vmul.f32 %v1770, %v1778
  %v1781 = vmul.f32 %v1771, %v1778
  %v1782 = vmul.f32 %v1772, %v1778
  %v1783 = vmul.f32 %v1773, %v1778
  %v1784 = vmul.f32 %v1774, %v1778
  %v1785 = vmul.f32 %v1775, %v1778
  %v1786 = vmul.f32 %v1776, %v1778
  %v1787 = vld [vmem:[%s19] sm:$0x1]
  %v1789 = vlaneseq
  %v1790 = vshrl.u32 %v1789, 7
  %v1791 = vsub.s32 0, %v1790
  %v1792 = vrot.slane %v1787, %v1791
  %v1794 = vmul.f32 %v1792, %v1779
  %v1795 = vmul.f32 %v1792, %v1780
  %v1796 = vmul.f32 %v1792, %v1781
  %v1797 = vmul.f32 %v1792, %v1782
  %v1798 = vmul.f32 %v1792, %v1783
  %v1799 = vmul.f32 %v1792, %v1784
  %v1800 = vmul.f32 %v1792, %v1785
  %v1801 = vmul.f32 %v1792, %v1786
  %v1802 = vld [vmem:[%s20] sm:$0x1]
  %v1804 = vlaneseq
  %v1805 = vshrl.u32 %v1804, 7
  %v1806 = vsub.s32 0, %v1805
  %v1807 = vrot.slane %v1802, %v1806
  %v1809 = vadd.f32 %v1794, %v1807
  %v1810 = vadd.f32 %v1795, %v1807
  %v1811 = vadd.f32 %v1796, %v1807
  %v1812 = vadd.f32 %v1797, %v1807
  %v1813 = vadd.f32 %v1798, %v1807
  %v1814 = vadd.f32 %v1799, %v1807
  %v1815 = vadd.f32 %v1800, %v1807
  %v1816 = vadd.f32 %v1801, %v1807
  %v1817 = vmax.f32 %v1809, 0.0
  %v1818 = vmax.f32 %v1810, 0.0
  %v1819 = vmax.f32 %v1811, 0.0
  %v1820 = vmax.f32 %v1812, 0.0
  %v1821 = vmax.f32 %v1813, 0.0
  %v1822 = vmax.f32 %v1814, 0.0
  %v1823 = vmax.f32 %v1815, 0.0
  %v1824 = vmax.f32 %v1816, 0.0
  %v1825 = vld [vmem:[%s21] sm:$0xff]
  %v1826 = vld [vmem:[%s21 + $0x8] sm:$0xff]
  %v1827 = vld [vmem:[%s21 + $0x10] sm:$0xff]
  %v1828 = vld [vmem:[%s21 + $0x18] sm:$0xff]
  %v1830 = vsel %vm95, %v1817, 0
  %v1833 = vsel %vm95, %v1818, 0
  %v1836 = vsel %vm95, %v1819, 0
  %v1839 = vsel %vm95, %v1820, 0
  %v1842 = vsel %vm95, %v1821, 0
  %v1845 = vsel %vm95, %v1822, 0
  %v1848 = vsel %vm95, %v1823, 0
  %v1851 = vsel %vm95, %v1824, 0
  %1853 = vmatprep.subr.mxu0 %v1826
  %1854 = vmatpush1.msra.mxu0 %v1825
  %1855 = vmatprep.subr.mxu0 %v1828
  %1856 = vmatpush1.msra.mxu0 %v1827
  %1857 = vmatprep.subr.mxu0 0.0
  %1858 = vmatpush1.msra.mxu0 0.0
  %1859 = vmatprep.subr.mxu0 0.0
  %1860 = vmatpush1.msra.mxu0 0.0
  %1861 = vmatprep.subr.mxu0 0.0
  %1862 = vmatpush1.msra.mxu0 0.0
  %1863 = vmatprep.subr.mxu0 0.0
  %1864 = vmatpush1.msra.mxu0 0.0
  %1865 = vmatprep.subr.mxu0 0.0
  %1866 = vmatpush1.msra.mxu0 0.0
  %1867 = vmatprep.subr.mxu0 0.0
  %1868 = vmatpush1.msra.mxu0 0.0
  %1869 = vmatprep.subr.mxu0 0.0
  %1870 = vmatpush1.msra.mxu0 0.0
  %1871 = vmatprep.subr.mxu0 0.0
  %1872 = vmatpush1.msra.mxu0 0.0
  %1873 = vmatprep.subr.mxu0 0.0
  %1874 = vmatpush1.msra.mxu0 0.0
  %1875 = vmatprep.subr.mxu0 0.0
  %1876 = vmatpush1.msra.mxu0 0.0
  %1877 = vmatprep.subr.mxu0 0.0
  %1878 = vmatpush1.msra.mxu0 0.0
  %1879 = vmatprep.subr.mxu0 0.0
  %1880 = vmatpush1.msra.mxu0 0.0
  %1881 = vmatprep.subr.mxu0 0.0
  %1882 = vmatpush1.msra.mxu0 0.0
  %1883 = vmatprep.subr.mxu0 0.0
  %1884 = vmatpush1.msra.mxu0 0.0
  %1885 = vmatprep.subr.mxu0 0.0
  %1886 = vmatpush1.msra.mxu0 0.0
  %1887 = vmatprep.subr.mxu0 0.0
  %1888 = vmatpush1.msra.mxu0 0.0
  %1889 = vmatprep.subr.mxu0 0.0
  %1890 = vmatpush1.msra.mxu0 0.0
  %1891 = vmatprep.subr.mxu0 0.0
  %1892 = vmatpush1.msra.mxu0 0.0
  %1893 = vmatprep.subr.mxu0 0.0
  %1894 = vmatpush1.msra.mxu0 0.0
  %1895 = vmatprep.subr.mxu0 0.0
  %1896 = vmatpush1.msra.mxu0 0.0
  %1897 = vmatprep.subr.mxu0 0.0
  %1898 = vmatpush1.msra.mxu0 0.0
  %1899 = vmatprep.subr.mxu0 0.0
  %1900 = vmatpush1.msra.mxu0 0.0
  %1901 = vmatprep.subr.mxu0 0.0
  %1902 = vmatpush1.msra.mxu0 0.0
  %1903 = vmatprep.subr.mxu0 0.0
  %1904 = vmatpush1.msra.mxu0 0.0
  %1905 = vmatprep.subr.mxu0 0.0
  %1906 = vmatpush1.msra.mxu0 0.0
  %1907 = vmatprep.subr.mxu0 0.0
  %1908 = vmatpush1.msra.mxu0 0.0
  %1909 = vmatprep.subr.mxu0 0.0
  %1910 = vmatpush1.msra.mxu0 0.0
  %1911 = vmatprep.subr.mxu0 0.0
  %1912 = vmatpush1.msra.mxu0 0.0
  %1913 = vmatprep.subr.mxu0 0.0
  %1914 = vmatpush1.msra.mxu0 0.0
  %1915 = vmatprep.subr.mxu0 0.0
  %1916 = vmatpush1.msra.mxu0 0.0
  %1917 = vmatprep.mubr.f32.mxu0 0.0
  %1918 = vmatmul.mubr.f32.gmra.mrb[0].mxu0 %v1830
  %v1919 = vpop.f32.mrb[0].mxu0
  %v1920 = vadd.f32 0.0, %v1919
  %v1921 = vpop.f32.mrb[0].mxu0
  %v1922 = vadd.f32 0.0, %v1921
  %1923 = vmatprep.mubr.f32.mxu0 0.0
  %1924 = vmatmul.mubr.f32.gmra.mrb[0].mxu0 %v1833
  %v1925 = vpop.f32.mrb[0].mxu0
  %v1926 = vadd.f32 0.0, %v1925
  %v1927 = vpop.f32.mrb[0].mxu0
  %v1928 = vadd.f32 0.0, %v1927
  %1929 = vmatprep.mubr.f32.mxu0 0.0
  %1930 = vmatmul.mubr.f32.gmra.mrb[0].mxu0 %v1836
  %v1931 = vpop.f32.mrb[0].mxu0
  %v1932 = vadd.f32 0.0, %v1931
  %v1933 = vpop.f32.mrb[0].mxu0
  %v1934 = vadd.f32 0.0, %v1933
  %1935 = vmatprep.mubr.f32.mxu0 0.0
  %1936 = vmatmul.mubr.f32.gmra.mrb[0].mxu0 %v1839
  %v1937 = vpop.f32.mrb[0].mxu0
  %v1938 = vadd.f32 0.0, %v1937
  %v1939 = vpop.f32.mrb[0].mxu0
  %v1940 = vadd.f32 0.0, %v1939
  %1941 = vmatprep.mubr.f32.mxu0 0.0
  %1942 = vmatmul.mubr.f32.gmra.mrb[0].mxu0 %v1842
  %v1943 = vpop.f32.mrb[0].mxu0
  %v1944 = vadd.f32 0.0, %v1943
  %v1945 = vpop.f32.mrb[0].mxu0
  %v1946 = vadd.f32 0.0, %v1945
  %1947 = vmatprep.mubr.f32.mxu0 0.0
  %1948 = vmatmul.mubr.f32.gmra.mrb[0].mxu0 %v1845
  %v1949 = vpop.f32.mrb[0].mxu0
  %v1950 = vadd.f32 0.0, %v1949
  %v1951 = vpop.f32.mrb[0].mxu0
  %v1952 = vadd.f32 0.0, %v1951
  %1953 = vmatprep.mubr.f32.mxu0 0.0
  %1954 = vmatmul.mubr.f32.gmra.mrb[0].mxu0 %v1848
  %v1955 = vpop.f32.mrb[0].mxu0
  %v1956 = vadd.f32 0.0, %v1955
  %v1957 = vpop.f32.mrb[0].mxu0
  %v1958 = vadd.f32 0.0, %v1957
  %1959 = vmatprep.mubr.f32.mxu0 0.0
  %1960 = vmatmul.mubr.f32.gmra.mrb[0].mxu0 %v1851
  %v1961 = vpop.f32.mrb[0].mxu0
  %v1962 = vadd.f32 0.0, %v1961
  %v1963 = vpop.f32.mrb[0].mxu0
  %v1964 = vadd.f32 0.0, %v1963
  %1965 = vdwg.mxu0
  %v1966 = vadd.f32 %v1920, %v1926
  %v1967 = vadd.f32 %v1966, %v1932
  %v1968 = vadd.f32 %v1967, %v1938
  %v1969 = vadd.f32 %v1968, %v1944
  %v1970 = vadd.f32 %v1969, %v1950
  %v1971 = vadd.f32 %v1970, %v1956
  %v1972 = vadd.f32 %v1971, %v1962
  %v1973 = vrot.slane %v1972, 4
  %v1974 = vadd.f32 %v1972, %v1973
  %v1975 = vrot.slane %v1974, 2
  %v1976 = vadd.f32 %v1974, %v1975
  %v1977 = vrot.slane %v1976, 1
  %v1978 = vadd.f32 %v1976, %v1977
  %v1979 = vadd.f32 %v1922, %v1928
  %v1980 = vadd.f32 %v1979, %v1934
  %v1981 = vadd.f32 %v1980, %v1940
  %v1982 = vadd.f32 %v1981, %v1946
  %v1983 = vadd.f32 %v1982, %v1952
  %v1984 = vadd.f32 %v1983, %v1958
  %v1985 = vadd.f32 %v1984, %v1964
  %v1986 = vrot.slane %v1985, 4
  %v1987 = vadd.f32 %v1985, %v1986
  %v1988 = vrot.slane %v1987, 2
  %v1989 = vadd.f32 %v1987, %v1988
  %v1990 = vrot.slane %v1989, 1
  %v1991 = vadd.f32 %v1989, %v1990
  %v1992 = vmul.f32 %v1978, %v259
  %v1993 = vmul.f32 %v1991, %v259
  %v1994 = vmul.f32 %v1920, %v1920
  %v1995 = vmul.f32 %v1922, %v1922
  %v1996 = vmul.f32 %v1926, %v1926
  %v1997 = vmul.f32 %v1928, %v1928
  %v1998 = vmul.f32 %v1932, %v1932
  %v1999 = vmul.f32 %v1934, %v1934
  %v2000 = vmul.f32 %v1938, %v1938
  %v2001 = vmul.f32 %v1940, %v1940
  %v2002 = vmul.f32 %v1944, %v1944
  %v2003 = vmul.f32 %v1946, %v1946
  %v2004 = vmul.f32 %v1950, %v1950
  %v2005 = vmul.f32 %v1952, %v1952
  %v2006 = vmul.f32 %v1956, %v1956
  %v2007 = vmul.f32 %v1958, %v1958
  %v2008 = vmul.f32 %v1962, %v1962
  %v2009 = vmul.f32 %v1964, %v1964
  %v2010 = vadd.f32 %v1994, %v1996
  %v2011 = vadd.f32 %v2010, %v1998
  %v2012 = vadd.f32 %v2011, %v2000
  %v2013 = vadd.f32 %v2012, %v2002
  %v2014 = vadd.f32 %v2013, %v2004
  %v2015 = vadd.f32 %v2014, %v2006
  %v2016 = vadd.f32 %v2015, %v2008
  %v2017 = vrot.slane %v2016, 4
  %v2018 = vadd.f32 %v2016, %v2017
  %v2019 = vrot.slane %v2018, 2
  %v2020 = vadd.f32 %v2018, %v2019
  %v2021 = vrot.slane %v2020, 1
  %v2022 = vadd.f32 %v2020, %v2021
  %v2023 = vadd.f32 %v1995, %v1997
  %v2024 = vadd.f32 %v2023, %v1999
  %v2025 = vadd.f32 %v2024, %v2001
  %v2026 = vadd.f32 %v2025, %v2003
  %v2027 = vadd.f32 %v2026, %v2005
  %v2028 = vadd.f32 %v2027, %v2007
  %v2029 = vadd.f32 %v2028, %v2009
  %v2030 = vrot.slane %v2029, 4
  %v2031 = vadd.f32 %v2029, %v2030
  %v2032 = vrot.slane %v2031, 2
  %v2033 = vadd.f32 %v2031, %v2032
  %v2034 = vrot.slane %v2033, 1
  %v2035 = vadd.f32 %v2033, %v2034
  %v2036 = vmul.f32 %v2022, %v259
  %v2037 = vmul.f32 %v2035, %v259
  %v2038 = vmul.f32 %v1992, %v1992
  %v2039 = vmul.f32 %v1993, %v1993
  %v2040 = vsub.f32 %v2036, %v2038
  %v2041 = vsub.f32 %v2037, %v2039
  %v2042 = vmax.f32 %v2040, 0.0
  %v2043 = vmax.f32 %v2041, 0.0
  %v2044 = vsub.f32 %v1920, %v1992
  %v2045 = vsub.f32 %v1922, %v1993
  %v2046 = vsub.f32 %v1926, %v1992
  %v2047 = vsub.f32 %v1928, %v1993
  %v2048 = vsub.f32 %v1932, %v1992
  %v2049 = vsub.f32 %v1934, %v1993
  %v2050 = vsub.f32 %v1938, %v1992
  %v2051 = vsub.f32 %v1940, %v1993
  %v2052 = vsub.f32 %v1944, %v1992
  %v2053 = vsub.f32 %v1946, %v1993
  %v2054 = vsub.f32 %v1950, %v1992
  %v2055 = vsub.f32 %v1952, %v1993
  %v2056 = vsub.f32 %v1956, %v1992
  %v2057 = vsub.f32 %v1958, %v1993
  %v2058 = vsub.f32 %v1962, %v1992
  %v2059 = vsub.f32 %v1964, %v1993
  %v2060 = vadd.f32 %v2042, 1e-05
  %v2061 = vadd.f32 %v2043, 1e-05
  %v2062 = vrsqrt.pop %v2060
  %v2063 = vrsqrt.pop %v2061
  %v2064 = vmul.f32 %v2044, %v2062
  %v2065 = vmul.f32 %v2045, %v2063
  %v2066 = vmul.f32 %v2046, %v2062
  %v2067 = vmul.f32 %v2047, %v2063
  %v2068 = vmul.f32 %v2048, %v2062
  %v2069 = vmul.f32 %v2049, %v2063
  %v2070 = vmul.f32 %v2050, %v2062
  %v2071 = vmul.f32 %v2051, %v2063
  %v2072 = vmul.f32 %v2052, %v2062
  %v2073 = vmul.f32 %v2053, %v2063
  %v2074 = vmul.f32 %v2054, %v2062
  %v2075 = vmul.f32 %v2055, %v2063
  %v2076 = vmul.f32 %v2056, %v2062
  %v2077 = vmul.f32 %v2057, %v2063
  %v2078 = vmul.f32 %v2058, %v2062
  %v2079 = vmul.f32 %v2059, %v2063
  %v2080 = vld [vmem:[%s22] sm:$0x3]
  %v2082 = vlaneseq
  %v2083 = vshrl.u32 %v2082, 7
  %v2084 = vsub.s32 0, %v2083
  %v2085 = vrot.slane %v2080, %v2084
  %v2086 = vlaneseq
  %v2087 = vshrl.u32 %v2086, 7
  %v2088 = vsub.s32 1, %v2087
  %v2089 = vrot.slane %v2080, %v2088
  %v2092 = vmul.f32 %v2085, %v2064
  %v2093 = vmul.f32 %v2089, %v2065
  %v2094 = vmul.f32 %v2085, %v2066
  %v2095 = vmul.f32 %v2089, %v2067
  %v2096 = vmul.f32 %v2085, %v2068
  %v2097 = vmul.f32 %v2089, %v2069
  %v2098 = vmul.f32 %v2085, %v2070
  %v2099 = vmul.f32 %v2089, %v2071
  %v2100 = vmul.f32 %v2085, %v2072
  %v2101 = vmul.f32 %v2089, %v2073
  %v2102 = vmul.f32 %v2085, %v2074
  %v2103 = vmul.f32 %v2089, %v2075
  %v2104 = vmul.f32 %v2085, %v2076
  %v2105 = vmul.f32 %v2089, %v2077
  %v2106 = vmul.f32 %v2085, %v2078
  %v2107 = vmul.f32 %v2089, %v2079
  %v2108 = vld [vmem:[%s23] sm:$0x3]
  %v2110 = vlaneseq
  %v2111 = vshrl.u32 %v2110, 7
  %v2112 = vsub.s32 0, %v2111
  %v2113 = vrot.slane %v2108, %v2112
  %v2114 = vlaneseq
  %v2115 = vshrl.u32 %v2114, 7
  %v2116 = vsub.s32 1, %v2115
  %v2117 = vrot.slane %v2108, %v2116
  %v2120 = vadd.f32 %v2092, %v2113
  %v2121 = vadd.f32 %v2093, %v2117
  %v2122 = vadd.f32 %v2094, %v2113
  %v2123 = vadd.f32 %v2095, %v2117
  %v2124 = vadd.f32 %v2096, %v2113
  %v2125 = vadd.f32 %v2097, %v2117
  %v2126 = vadd.f32 %v2098, %v2113
  %v2127 = vadd.f32 %v2099, %v2117
  %v2128 = vadd.f32 %v2100, %v2113
  %v2129 = vadd.f32 %v2101, %v2117
  %v2130 = vadd.f32 %v2102, %v2113
  %v2131 = vadd.f32 %v2103, %v2117
  %v2132 = vadd.f32 %v2104, %v2113
  %v2133 = vadd.f32 %v2105, %v2117
  %v2134 = vadd.f32 %v2106, %v2113
  %v2135 = vadd.f32 %v2107, %v2117
  %v2136 = vmax.f32 %v2120, 0.0
  %v2137 = vmax.f32 %v2121, 0.0
  %v2138 = vmax.f32 %v2122, 0.0
  %v2139 = vmax.f32 %v2123, 0.0
  %v2140 = vmax.f32 %v2124, 0.0
  %v2141 = vmax.f32 %v2125, 0.0
  %v2142 = vmax.f32 %v2126, 0.0
  %v2143 = vmax.f32 %v2127, 0.0
  %v2144 = vmax.f32 %v2128, 0.0
  %v2145 = vmax.f32 %v2129, 0.0
  %v2146 = vmax.f32 %v2130, 0.0
  %v2147 = vmax.f32 %v2131, 0.0
  %v2148 = vmax.f32 %v2132, 0.0
  %v2149 = vmax.f32 %v2133, 0.0
  %v2150 = vmax.f32 %v2134, 0.0
  %v2151 = vmax.f32 %v2135, 0.0
  %v2152 = vld [vmem:[%s24] sm:$0xff]
  %v2153 = vld [vmem:[%s24 + $0x8] sm:$0xff]
  %v2154 = vld [vmem:[%s24 + $0x10] sm:$0xff]
  %v2155 = vld [vmem:[%s24 + $0x18] sm:$0xff]
  %v2156 = vld [vmem:[%s24 + $0x20] sm:$0xff]
  %v2157 = vld [vmem:[%s24 + $0x28] sm:$0xff]
  %v2158 = vld [vmem:[%s24 + $0x30] sm:$0xff]
  %v2159 = vld [vmem:[%s24 + $0x38] sm:$0xff]
  %v2160 = vld [vmem:[%s24 + $0x40] sm:$0xff]
  %v2161 = vld [vmem:[%s24 + $0x48] sm:$0xff]
  %v2162 = vld [vmem:[%s24 + $0x50] sm:$0xff]
  %v2163 = vld [vmem:[%s24 + $0x58] sm:$0xff]
  %v2164 = vld [vmem:[%s24 + $0x60] sm:$0xff]
  %v2165 = vld [vmem:[%s24 + $0x68] sm:$0xff]
  %v2166 = vld [vmem:[%s24 + $0x70] sm:$0xff]
  %v2167 = vld [vmem:[%s24 + $0x78] sm:$0xff]
  %v2168 = vld [vmem:[%s24 + $0x80] sm:$0xff]
  %v2169 = vld [vmem:[%s24 + $0x88] sm:$0xff]
  %v2170 = vld [vmem:[%s24 + $0x90] sm:$0xff]
  %v2171 = vld [vmem:[%s24 + $0x98] sm:$0xff]
  %v2172 = vld [vmem:[%s24 + $0xa0] sm:$0xff]
  %v2173 = vld [vmem:[%s24 + $0xa8] sm:$0xff]
  %v2174 = vld [vmem:[%s24 + $0xb0] sm:$0xff]
  %v2175 = vld [vmem:[%s24 + $0xb8] sm:$0xff]
  %v2176 = vld [vmem:[%s24 + $0xc0] sm:$0xff]
  %v2177 = vld [vmem:[%s24 + $0xc8] sm:$0xff]
  %v2178 = vld [vmem:[%s24 + $0xd0] sm:$0xff]
  %v2179 = vld [vmem:[%s24 + $0xd8] sm:$0xff]
  %v2180 = vld [vmem:[%s24 + $0xe0] sm:$0xff]
  %v2181 = vld [vmem:[%s24 + $0xe8] sm:$0xff]
  %v2182 = vld [vmem:[%s24 + $0xf0] sm:$0xff]
  %v2183 = vld [vmem:[%s24 + $0xf8] sm:$0xff]
  %v2184 = vld [vmem:[%s25] sm:$0x1]
  %v2186 = vlaneseq
  %v2187 = vshrl.u32 %v2186, 7
  %v2188 = vsub.s32 0, %v2187
  %v2189 = vrot.slane %v2184, %v2188
  %2191 = vmatprep.subr.mxu0 0.0
  %2192 = vmatpush1.msra.mxu0 %v2152
  %2193 = vmatprep.subr.mxu0 0.0
  %2194 = vmatpush1.msra.mxu0 %v2153
  %2195 = vmatprep.subr.mxu0 0.0
  %2196 = vmatpush1.msra.mxu0 %v2154
  %2197 = vmatprep.subr.mxu0 0.0
  %2198 = vmatpush1.msra.mxu0 %v2155
  %2199 = vmatprep.subr.mxu0 0.0
  %2200 = vmatpush1.msra.mxu0 %v2156
  %2201 = vmatprep.subr.mxu0 0.0
  %2202 = vmatpush1.msra.mxu0 %v2157
  %2203 = vmatprep.subr.mxu0 0.0
  %2204 = vmatpush1.msra.mxu0 %v2158
  %2205 = vmatprep.subr.mxu0 0.0
  %2206 = vmatpush1.msra.mxu0 %v2159
  %2207 = vmatprep.subr.mxu0 0.0
  %2208 = vmatpush1.msra.mxu0 %v2160
  %2209 = vmatprep.subr.mxu0 0.0
  %2210 = vmatpush1.msra.mxu0 %v2161
  %2211 = vmatprep.subr.mxu0 0.0
  %2212 = vmatpush1.msra.mxu0 %v2162
  %2213 = vmatprep.subr.mxu0 0.0
  %2214 = vmatpush1.msra.mxu0 %v2163
  %2215 = vmatprep.subr.mxu0 0.0
  %2216 = vmatpush1.msra.mxu0 %v2164
  %2217 = vmatprep.subr.mxu0 0.0
  %2218 = vmatpush1.msra.mxu0 %v2165
  %2219 = vmatprep.subr.mxu0 0.0
  %2220 = vmatpush1.msra.mxu0 %v2166
  %2221 = vmatprep.subr.mxu0 0.0
  %2222 = vmatpush1.msra.mxu0 %v2167
  %2223 = vmatprep.subr.mxu0 0.0
  %2224 = vmatpush1.msra.mxu0 %v2168
  %2225 = vmatprep.subr.mxu0 0.0
  %2226 = vmatpush1.msra.mxu0 %v2169
  %2227 = vmatprep.subr.mxu0 0.0
  %2228 = vmatpush1.msra.mxu0 %v2170
  %2229 = vmatprep.subr.mxu0 0.0
  %2230 = vmatpush1.msra.mxu0 %v2171
  %2231 = vmatprep.subr.mxu0 0.0
  %2232 = vmatpush1.msra.mxu0 %v2172
  %2233 = vmatprep.subr.mxu0 0.0
  %2234 = vmatpush1.msra.mxu0 %v2173
  %2235 = vmatprep.subr.mxu0 0.0
  %2236 = vmatpush1.msra.mxu0 %v2174
  %2237 = vmatprep.subr.mxu0 0.0
  %2238 = vmatpush1.msra.mxu0 %v2175
  %2239 = vmatprep.subr.mxu0 0.0
  %2240 = vmatpush1.msra.mxu0 %v2176
  %2241 = vmatprep.subr.mxu0 0.0
  %2242 = vmatpush1.msra.mxu0 %v2177
  %2243 = vmatprep.subr.mxu0 0.0
  %2244 = vmatpush1.msra.mxu0 %v2178
  %2245 = vmatprep.subr.mxu0 0.0
  %2246 = vmatpush1.msra.mxu0 %v2179
  %2247 = vmatprep.subr.mxu0 0.0
  %2248 = vmatpush1.msra.mxu0 %v2180
  %2249 = vmatprep.subr.mxu0 0.0
  %2250 = vmatpush1.msra.mxu0 %v2181
  %2251 = vmatprep.subr.mxu0 0.0
  %2252 = vmatpush1.msra.mxu0 %v2182
  %2253 = vmatprep.subr.mxu0 0.0
  %2254 = vmatpush1.msra.mxu0 %v2183
  %2255 = vmatprep.mubr.f32.mxu0 %v2137
  %2256 = vmatmul.mubr.f32.gmra.mrb[0].mxu0 %v2136
  %v2257 = vpop.f32.mrb[0].mxu0
  %v2258 = vadd.f32 %v2189, %v2257
  %v2259 = vpop.f32.mrb[0].mxu0
  %2260 = vmatprep.mubr.f32.mxu0 %v2139
  %2261 = vmatmul.mubr.f32.gmra.mrb[0].mxu0 %v2138
  %v2262 = vpop.f32.mrb[0].mxu0
  %v2263 = vadd.f32 %v2189, %v2262
  %v2264 = vpop.f32.mrb[0].mxu0
  %2265 = vmatprep.mubr.f32.mxu0 %v2141
  %2266 = vmatmul.mubr.f32.gmra.mrb[0].mxu0 %v2140
  %v2267 = vpop.f32.mrb[0].mxu0
  %v2268 = vadd.f32 %v2189, %v2267
  %v2269 = vpop.f32.mrb[0].mxu0
  %2270 = vmatprep.mubr.f32.mxu0 %v2143
  %2271 = vmatmul.mubr.f32.gmra.mrb[0].mxu0 %v2142
  %v2272 = vpop.f32.mrb[0].mxu0
  %v2273 = vadd.f32 %v2189, %v2272
  %v2274 = vpop.f32.mrb[0].mxu0
  %2275 = vmatprep.mubr.f32.mxu0 %v2145
  %2276 = vmatmul.mubr.f32.gmra.mrb[0].mxu0 %v2144
  %v2277 = vpop.f32.mrb[0].mxu0
  %v2278 = vadd.f32 %v2189, %v2277
  %v2279 = vpop.f32.mrb[0].mxu0
  %2280 = vmatprep.mubr.f32.mxu0 %v2147
  %2281 = vmatmul.mubr.f32.gmra.mrb[0].mxu0 %v2146
  %v2282 = vpop.f32.mrb[0].mxu0
  %v2283 = vadd.f32 %v2189, %v2282
  %v2284 = vpop.f32.mrb[0].mxu0
  %2285 = vmatprep.mubr.f32.mxu0 %v2149
  %2286 = vmatmul.mubr.f32.gmra.mrb[0].mxu0 %v2148
  %v2287 = vpop.f32.mrb[0].mxu0
  %v2288 = vadd.f32 %v2189, %v2287
  %v2289 = vpop.f32.mrb[0].mxu0
  %2290 = vmatprep.mubr.f32.mxu0 %v2151
  %2291 = vmatmul.mubr.f32.gmra.mrb[0].mxu0 %v2150
  %v2292 = vpop.f32.mrb[0].mxu0
  %v2293 = vadd.f32 %v2189, %v2292
  %v2294 = vpop.f32.mrb[0].mxu0
  %2295 = vdwg.mxu0
  %v2296 = vxor.u32 %v2258, 2147483648
  %v2297 = vxor.u32 %v2263, 2147483648
  %v2298 = vxor.u32 %v2268, 2147483648
  %v2299 = vxor.u32 %v2273, 2147483648
  %v2300 = vxor.u32 %v2278, 2147483648
  %v2301 = vxor.u32 %v2283, 2147483648
  %v2302 = vxor.u32 %v2288, 2147483648
  %v2303 = vxor.u32 %v2293, 2147483648
  %v2304 = vmul.f32 %v2296, 1.442695
  %v2305 = vpow.pop %v2304
  %v2306 = vmul.f32 %v2297, 1.442695
  %v2307 = vpow.pop %v2306
  %v2308 = vmul.f32 %v2298, 1.442695
  %v2309 = vpow.pop %v2308
  %v2310 = vmul.f32 %v2299, 1.442695
  %v2311 = vpow.pop %v2310
  %v2312 = vmul.f32 %v2300, 1.442695
  %v2313 = vpow.pop %v2312
  %v2314 = vmul.f32 %v2301, 1.442695
  %v2315 = vpow.pop %v2314
  %v2316 = vmul.f32 %v2302, 1.442695
  %v2317 = vpow.pop %v2316
  %v2318 = vmul.f32 %v2303, 1.442695
  %v2319 = vpow.pop %v2318
  %v2320 = vadd.f32 %v2305, 1.0
  %v2321 = vadd.f32 %v2307, 1.0
  %v2322 = vadd.f32 %v2309, 1.0
  %v2323 = vadd.f32 %v2311, 1.0
  %v2324 = vadd.f32 %v2313, 1.0
  %v2325 = vadd.f32 %v2315, 1.0
  %v2326 = vadd.f32 %v2317, 1.0
  %v2327 = vadd.f32 %v2319, 1.0
  %v2328 = vrcp.pop %v2320
  %v2329 = vmul.f32 1.0, %v2328
  %v2330 = vrcp.pop %v2321
  %v2331 = vmul.f32 1.0, %v2330
  %v2332 = vrcp.pop %v2322
  %v2333 = vmul.f32 1.0, %v2332
  %v2334 = vrcp.pop %v2323
  %v2335 = vmul.f32 1.0, %v2334
  %v2336 = vrcp.pop %v2324
  %v2337 = vmul.f32 1.0, %v2336
  %v2338 = vrcp.pop %v2325
  %v2339 = vmul.f32 1.0, %v2338
  %v2340 = vrcp.pop %v2326
  %v2341 = vmul.f32 1.0, %v2340
  %v2342 = vrcp.pop %v2327
  %v2343 = vmul.f32 1.0, %v2342
  %2345 = vset.pattern.permute.xlu0 0
  %2346 = vperm.xlu0 %2345, %v1492
  %v2347 = vpop.permute.xlu0 %2346
  %2350 = vset.pattern.permute.xlu0 0
  %2351 = vperm.xlu0 %2350, %v1493
  %v2352 = vpop.permute.xlu0 %2351
  %2355 = vset.pattern.permute.xlu0 0
  %2356 = vperm.xlu0 %2355, %v1494
  %v2357 = vpop.permute.xlu0 %2356
  %2360 = vset.pattern.permute.xlu0 0
  %2361 = vperm.xlu0 %2360, %v1495
  %v2362 = vpop.permute.xlu0 %2361
  %2365 = vset.pattern.permute.xlu0 0
  %2366 = vperm.xlu0 %2365, %v1496
  %v2367 = vpop.permute.xlu0 %2366
  %2370 = vset.pattern.permute.xlu0 0
  %2371 = vperm.xlu0 %2370, %v1497
  %v2372 = vpop.permute.xlu0 %2371
  %2375 = vset.pattern.permute.xlu0 0
  %2376 = vperm.xlu0 %2375, %v1498
  %v2377 = vpop.permute.xlu0 %2376
  %2380 = vset.pattern.permute.xlu0 0
  %2381 = vperm.xlu0 %2380, %v1499
  %v2382 = vpop.permute.xlu0 %2381
  %v2384 = vmul.f32 %v2347, %v2329
  %v2385 = vmul.f32 %v2352, %v2331
  %v2386 = vmul.f32 %v2357, %v2333
  %v2387 = vmul.f32 %v2362, %v2335
  %v2388 = vmul.f32 %v2367, %v2337
  %v2389 = vmul.f32 %v2372, %v2339
  %v2390 = vmul.f32 %v2377, %v2341
  %v2391 = vmul.f32 %v2382, %v2343
  %2392 = vset.pattern.permute.xlu0 1
  %2393 = vperm.xlu0 %2392, %v1492
  %v2394 = vpop.permute.xlu0 %2393
  %2396 = vset.pattern.permute.xlu0 1
  %2397 = vperm.xlu0 %2396, %v1493
  %v2398 = vpop.permute.xlu0 %2397
  %2400 = vset.pattern.permute.xlu0 1
  %2401 = vperm.xlu0 %2400, %v1494
  %v2402 = vpop.permute.xlu0 %2401
  %2404 = vset.pattern.permute.xlu0 1
  %2405 = vperm.xlu0 %2404, %v1495
  %v2406 = vpop.permute.xlu0 %2405
  %2408 = vset.pattern.permute.xlu0 1
  %2409 = vperm.xlu0 %2408, %v1496
  %v2410 = vpop.permute.xlu0 %2409
  %2412 = vset.pattern.permute.xlu0 1
  %2413 = vperm.xlu0 %2412, %v1497
  %v2414 = vpop.permute.xlu0 %2413
  %2416 = vset.pattern.permute.xlu0 1
  %2417 = vperm.xlu0 %2416, %v1498
  %v2418 = vpop.permute.xlu0 %2417
  %2420 = vset.pattern.permute.xlu0 1
  %2421 = vperm.xlu0 %2420, %v1499
  %v2422 = vpop.permute.xlu0 %2421
  %v2424 = vmul.f32 %v2394, %v2329
  %v2425 = vmul.f32 %v2398, %v2331
  %v2426 = vmul.f32 %v2402, %v2333
  %v2427 = vmul.f32 %v2406, %v2335
  %v2428 = vmul.f32 %v2410, %v2337
  %v2429 = vmul.f32 %v2414, %v2339
  %v2430 = vmul.f32 %v2418, %v2341
  %v2431 = vmul.f32 %v2422, %v2343
  %2440 = vrot.lane.b32.xlu0 %v2424, 112
  %v2441 = vpop.permute.xlu0 %2440
  %2442 = vrot.lane.b32.xlu0 %v2425, 112
  %v2443 = vpop.permute.xlu0 %2442
  %2444 = vrot.lane.b32.xlu0 %v2426, 112
  %v2445 = vpop.permute.xlu0 %2444
  %2446 = vrot.lane.b32.xlu0 %v2427, 112
  %v2447 = vpop.permute.xlu0 %2446
  %2448 = vrot.lane.b32.xlu0 %v2428, 112
  %v2449 = vpop.permute.xlu0 %2448
  %2450 = vrot.lane.b32.xlu0 %v2429, 112
  %v2451 = vpop.permute.xlu0 %2450
  %2452 = vrot.lane.b32.xlu0 %v2430, 112
  %v2453 = vpop.permute.xlu0 %2452
  %2454 = vrot.lane.b32.xlu0 %v2431, 112
  %v2455 = vpop.permute.xlu0 %2454
  %v2464 = vadd.f32 %v2384, %v2441
  %v2465 = vadd.f32 %v2385, %v2443
  %v2466 = vadd.f32 %v2386, %v2445
  %v2467 = vadd.f32 %v2387, %v2447
  %v2468 = vadd.f32 %v2388, %v2449
  %v2469 = vadd.f32 %v2389, %v2451
  %v2470 = vadd.f32 %v2390, %v2453
  %v2471 = vadd.f32 %v2391, %v2455
  %2472 = vset.pattern.permute.xlu0 2
  %2473 = vperm.xlu0 %2472, %v1492
  %v2474 = vpop.permute.xlu0 %2473
  %2476 = vset.pattern.permute.xlu0 2
  %2477 = vperm.xlu0 %2476, %v1493
  %v2478 = vpop.permute.xlu0 %2477
  %2480 = vset.pattern.permute.xlu0 2
  %2481 = vperm.xlu0 %2480, %v1494
  %v2482 = vpop.permute.xlu0 %2481
  %2484 = vset.pattern.permute.xlu0 2
  %2485 = vperm.xlu0 %2484, %v1495
  %v2486 = vpop.permute.xlu0 %2485
  %2488 = vset.pattern.permute.xlu0 2
  %2489 = vperm.xlu0 %2488, %v1496
  %v2490 = vpop.permute.xlu0 %2489
  %2492 = vset.pattern.permute.xlu0 2
  %2493 = vperm.xlu0 %2492, %v1497
  %v2494 = vpop.permute.xlu0 %2493
  %2496 = vset.pattern.permute.xlu0 2
  %2497 = vperm.xlu0 %2496, %v1498
  %v2498 = vpop.permute.xlu0 %2497
  %2500 = vset.pattern.permute.xlu0 2
  %2501 = vperm.xlu0 %2500, %v1499
  %v2502 = vpop.permute.xlu0 %2501
  %v2504 = vmul.f32 %v2474, %v2329
  %v2505 = vmul.f32 %v2478, %v2331
  %v2506 = vmul.f32 %v2482, %v2333
  %v2507 = vmul.f32 %v2486, %v2335
  %v2508 = vmul.f32 %v2490, %v2337
  %v2509 = vmul.f32 %v2494, %v2339
  %v2510 = vmul.f32 %v2498, %v2341
  %v2511 = vmul.f32 %v2502, %v2343
  %2520 = vrot.lane.b32.xlu0 %v2504, 96
  %v2521 = vpop.permute.xlu0 %2520
  %2522 = vrot.lane.b32.xlu0 %v2505, 96
  %v2523 = vpop.permute.xlu0 %2522
  %2524 = vrot.lane.b32.xlu0 %v2506, 96
  %v2525 = vpop.permute.xlu0 %2524
  %2526 = vrot.lane.b32.xlu0 %v2507, 96
  %v2527 = vpop.permute.xlu0 %2526
  %2528 = vrot.lane.b32.xlu0 %v2508, 96
  %v2529 = vpop.permute.xlu0 %2528
  %2530 = vrot.lane.b32.xlu0 %v2509, 96
  %v2531 = vpop.permute.xlu0 %2530
  %2532 = vrot.lane.b32.xlu0 %v2510, 96
  %v2533 = vpop.permute.xlu0 %2532
  %2534 = vrot.lane.b32.xlu0 %v2511, 96
  %v2535 = vpop.permute.xlu0 %2534
  %v2544 = vadd.f32 %v2464, %v2521
  %v2545 = vadd.f32 %v2465, %v2523
  %v2546 = vadd.f32 %v2466, %v2525
  %v2547 = vadd.f32 %v2467, %v2527
  %v2548 = vadd.f32 %v2468, %v2529
  %v2549 = vadd.f32 %v2469, %v2531
  %v2550 = vadd.f32 %v2470, %v2533
  %v2551 = vadd.f32 %v2471, %v2535
  %2552 = vset.pattern.permute.xlu0 3
  %2553 = vperm.xlu0 %2552, %v1492
  %v2554 = vpop.permute.xlu0 %2553
  %2556 = vset.pattern.permute.xlu0 3
  %2557 = vperm.xlu0 %2556, %v1493
  %v2558 = vpop.permute.xlu0 %2557
  %2560 = vset.pattern.permute.xlu0 3
  %2561 = vperm.xlu0 %2560, %v1494
  %v2562 = vpop.permute.xlu0 %2561
  %2564 = vset.pattern.permute.xlu0 3
  %2565 = vperm.xlu0 %2564, %v1495
  %v2566 = vpop.permute.xlu0 %2565
  %2568 = vset.pattern.permute.xlu0 3
  %2569 = vperm.xlu0 %2568, %v1496
  %v2570 = vpop.permute.xlu0 %2569
  %2572 = vset.pattern.permute.xlu0 3
  %2573 = vperm.xlu0 %2572, %v1497
  %v2574 = vpop.permute.xlu0 %2573
  %2576 = vset.pattern.permute.xlu0 3
  %2577 = vperm.xlu0 %2576, %v1498
  %v2578 = vpop.permute.xlu0 %2577
  %2580 = vset.pattern.permute.xlu0 3
  %2581 = vperm.xlu0 %2580, %v1499
  %v2582 = vpop.permute.xlu0 %2581
  %v2584 = vmul.f32 %v2554, %v2329
  %v2585 = vmul.f32 %v2558, %v2331
  %v2586 = vmul.f32 %v2562, %v2333
  %v2587 = vmul.f32 %v2566, %v2335
  %v2588 = vmul.f32 %v2570, %v2337
  %v2589 = vmul.f32 %v2574, %v2339
  %v2590 = vmul.f32 %v2578, %v2341
  %v2591 = vmul.f32 %v2582, %v2343
  %2600 = vrot.lane.b32.xlu0 %v2584, 80
  %v2601 = vpop.permute.xlu0 %2600
  %2602 = vrot.lane.b32.xlu0 %v2585, 80
  %v2603 = vpop.permute.xlu0 %2602
  %2604 = vrot.lane.b32.xlu0 %v2586, 80
  %v2605 = vpop.permute.xlu0 %2604
  %2606 = vrot.lane.b32.xlu0 %v2587, 80
  %v2607 = vpop.permute.xlu0 %2606
  %2608 = vrot.lane.b32.xlu0 %v2588, 80
  %v2609 = vpop.permute.xlu0 %2608
  %2610 = vrot.lane.b32.xlu0 %v2589, 80
  %v2611 = vpop.permute.xlu0 %2610
  %2612 = vrot.lane.b32.xlu0 %v2590, 80
  %v2613 = vpop.permute.xlu0 %2612
  %2614 = vrot.lane.b32.xlu0 %v2591, 80
  %v2615 = vpop.permute.xlu0 %2614
  %v2624 = vadd.f32 %v2544, %v2601
  %v2625 = vadd.f32 %v2545, %v2603
  %v2626 = vadd.f32 %v2546, %v2605
  %v2627 = vadd.f32 %v2547, %v2607
  %v2628 = vadd.f32 %v2548, %v2609
  %v2629 = vadd.f32 %v2549, %v2611
  %v2630 = vadd.f32 %v2550, %v2613
  %v2631 = vadd.f32 %v2551, %v2615
  %2640 = vrot.lane.b32.xlu0 %v985, 16
  %v2641 = vpop.permute.xlu0 %2640
  %2642 = vrot.lane.b32.xlu0 %v990, 16
  %v2643 = vpop.permute.xlu0 %2642
  %2644 = vrot.lane.b32.xlu0 %v995, 16
  %v2645 = vpop.permute.xlu0 %2644
  %2646 = vrot.lane.b32.xlu0 %v1000, 16
  %v2647 = vpop.permute.xlu0 %2646
  %2648 = vrot.lane.b32.xlu0 %v1005, 16
  %v2649 = vpop.permute.xlu0 %2648
  %2650 = vrot.lane.b32.xlu0 %v1010, 16
  %v2651 = vpop.permute.xlu0 %2650
  %2652 = vrot.lane.b32.xlu0 %v1015, 16
  %v2653 = vpop.permute.xlu0 %2652
  %2654 = vrot.lane.b32.xlu0 %v1020, 16
  %v2655 = vpop.permute.xlu0 %2654
  %2664 = vrot.lane.b32.xlu0 %v1492, 24
  %v2665 = vpop.permute.xlu0 %2664
  %2666 = vrot.lane.b32.xlu0 %v1493, 24
  %v2667 = vpop.permute.xlu0 %2666
  %2668 = vrot.lane.b32.xlu0 %v1494, 24
  %v2669 = vpop.permute.xlu0 %2668
  %2670 = vrot.lane.b32.xlu0 %v1495, 24
  %v2671 = vpop.permute.xlu0 %2670
  %2672 = vrot.lane.b32.xlu0 %v1496, 24
  %v2673 = vpop.permute.xlu0 %2672
  %2674 = vrot.lane.b32.xlu0 %v1497, 24
  %v2675 = vpop.permute.xlu0 %2674
  %2676 = vrot.lane.b32.xlu0 %v1498, 24
  %v2677 = vpop.permute.xlu0 %2676
  %2678 = vrot.lane.b32.xlu0 %v1499, 24
  %v2679 = vpop.permute.xlu0 %2678
  %2696 = vrot.lane.b32.xlu0 %v2329, 28
  %v2697 = vpop.permute.xlu0 %2696
  %2698 = vrot.lane.b32.xlu0 %v2331, 28
  %v2699 = vpop.permute.xlu0 %2698
  %2700 = vrot.lane.b32.xlu0 %v2333, 28
  %v2701 = vpop.permute.xlu0 %2700
  %2702 = vrot.lane.b32.xlu0 %v2335, 28
  %v2703 = vpop.permute.xlu0 %2702
  %2704 = vrot.lane.b32.xlu0 %v2337, 28
  %v2705 = vpop.permute.xlu0 %2704
  %2706 = vrot.lane.b32.xlu0 %v2339, 28
  %v2707 = vpop.permute.xlu0 %2706
  %2708 = vrot.lane.b32.xlu0 %v2341, 28
  %v2709 = vpop.permute.xlu0 %2708
  %2710 = vrot.lane.b32.xlu0 %v2343, 28
  %v2711 = vpop.permute.xlu0 %2710
  %v2720 = vsel %vm95, %v2624, %v2641
  %v2721 = vsel %vm95, %v2625, %v2643
  %v2722 = vsel %vm95, %v2626, %v2645
  %v2723 = vsel %vm95, %v2627, %v2647
  %v2724 = vsel %vm95, %v2628, %v2649
  %v2725 = vsel %vm95, %v2629, %v2651
  %v2726 = vsel %vm95, %v2630, %v2653
  %v2727 = vsel %vm95, %v2631, %v2655
  %vm2728 = vcmask 162816
  %v2729 = vsel %vm2728, %v2720, %v2641
  %v2730 = vsel %vm2728, %v2721, %v2643
  %v2731 = vsel %vm2728, %v2722, %v2645
  %v2732 = vsel %vm2728, %v2723, %v2647
  %v2733 = vsel %vm2728, %v2724, %v2649
  %v2734 = vsel %vm2728, %v2725, %v2651
  %v2735 = vsel %vm2728, %v2726, %v2653
  %v2736 = vsel %vm2728, %v2727, %v2655
  %vm2737 = vcmask 195584
  %v2738 = vsel %vm2737, %v2729, %v2665
  %v2739 = vsel %vm2737, %v2730, %v2667
  %v2740 = vsel %vm2737, %v2731, %v2669
  %v2741 = vsel %vm2737, %v2732, %v2671
  %v2742 = vsel %vm2737, %v2733, %v2673
  %v2743 = vsel %vm2737, %v2734, %v2675
  %v2744 = vsel %vm2737, %v2735, %v2677
  %v2745 = vsel %vm2737, %v2736, %v2679
  %vm2746 = vcmask 228352
  %v2747 = vsel %vm2746, %v2738, %v2697
  %v2748 = vsel %vm2746, %v2739, %v2699
  %v2749 = vsel %vm2746, %v2740, %v2701
  %v2750 = vsel %vm2746, %v2741, %v2703
  %v2751 = vsel %vm2746, %v2742, %v2705
  %v2752 = vsel %vm2746, %v2743, %v2707
  %v2753 = vsel %vm2746, %v2744, %v2709
  %v2754 = vsel %vm2746, %v2745, %v2711
  %vm2755 = vcmask 752640
  %2756 = vst.msk [vmem:[%s26] sm:$0xff] %vm2755, %v2747
  %2757 = vst.msk [vmem:[%s26 + $0x8] sm:$0xff] %vm2755, %v2748
  %2758 = vst.msk [vmem:[%s26 + $0x10] sm:$0xff] %vm2755, %v2749
  %2759 = vst.msk [vmem:[%s26 + $0x18] sm:$0xff] %vm2755, %v2750
  %2760 = vst.msk [vmem:[%s26 + $0x20] sm:$0xff] %vm2755, %v2751
  %2761 = vst.msk [vmem:[%s26 + $0x28] sm:$0xff] %vm2755, %v2752
  %2762 = vst.msk [vmem:[%s26 + $0x30] sm:$0xff] %vm2755, %v2753
  %2763 = vst.msk [vmem:[%s26 + $0x38] sm:$0xff] %vm2755, %v2754
  // Predicated region
  $region106: #{pgmsu_forward.1} parent=0 // pred_check
    _
  $region107: #{pgmsu_forward.1} parent=0 // pred_check_branch
    %2765 = sbr.rel (0) target = $region109
  $region108: #{pgmsu_forward.1} parent=0 // pred_region
    _
  $region109: #{pgmsu_forward.1} parent=0 // pred_fallthru
    _
  // Predicated region
  $region110: #{pgmsu_forward.1} parent=0 // pred_check
    _
  $region111: #{pgmsu_forward.1} parent=0 // pred_check_branch
    %2767 = sbr.rel (0) target = $region113
  $region112: #{pgmsu_forward.1} parent=0 // pred_region
    _
  $region113: #{pgmsu_forward.1} parent=0 // pred_fallthru
    _

</llo_original>
